<compile_context>
chip_gen: v6e
topology: v6e:2x2x1
jax: 0.10.0
libtpu: 0.0.40
codegen_flags: <defaults>
</compile_context>

<pallas_src>
import functools

import jax
import jax.numpy as jnp
from jax.experimental import pallas as pl
from jax.experimental.pallas import tpu as pltpu


def encoder_kernel(x_ref, wqkv_ref, wd_ref, w1_ref, w2_ref, pd_ref, pf_ref,
                   o_ref, act_ref, *, num_heads: int, n_ff_chunks: int):
    """Grid = (batch, layer).  One step applies one encoder layer to one
    batch element; the running activation is carried in VMEM (act_ref)."""
    l = pl.program_id(1)
    n_layers = pl.num_programs(1)

    @pl.when(l == 0)
    def _():
        act_ref[...] = x_ref[...]

    x = act_ref[...]                                  # (S, D) f32
    S, D = x.shape
    depth = D // num_heads

    pd = pd_ref[...]                                  # (9, D) f32, read once
    bq, bk, bv, bd = pd[0], pd[1], pd[2], pd[3]       # bq already pre-scaled
    g1, be1 = pd[4], pd[5]
    b2 = pd[6]
    g2, be2 = pd[7], pd[8]
    b1 = pf_ref[0]                                    # (d_ff,) f32

    x_bf = x.astype(jnp.bfloat16)

    # --- fused QKV projection (scale folded into wq/bq on host) ---
    qkv = jnp.dot(x_bf, wqkv_ref[...],
                  preferred_element_type=jnp.float32)            # (S, 3D) f32
    q = qkv[:, 0 * D:1 * D] + bq
    k = qkv[:, 1 * D:2 * D] + bk
    v = qkv[:, 2 * D:3 * D] + bv

    # --- batched-head attention (no per-head lane slicing / small matmuls) ---
    qh = q.reshape(S, num_heads, depth).transpose(1, 0, 2).astype(jnp.bfloat16)
    kh = k.reshape(S, num_heads, depth).transpose(1, 0, 2).astype(jnp.bfloat16)
    vh = v.reshape(S, num_heads, depth).transpose(1, 0, 2).astype(jnp.bfloat16)
    scores = jnp.einsum("hqd,hkd->hqk", qh, kh,
                        preferred_element_type=jnp.float32)       # (H, S, S)
    scores = scores - jnp.max(scores, axis=-1, keepdims=True)
    e = jnp.exp(scores)                                           # f32 exp (safe on all gens)
    p = e * pl.reciprocal(jnp.sum(e, axis=-1, keepdims=True), approx=True)
    ctx = jnp.einsum("hqk,hkd->hqd", p.astype(jnp.bfloat16), vh,
                     preferred_element_type=jnp.float32)          # (H, S, depth)
    ctx = ctx.transpose(1, 0, 2).reshape(S, D)

    # --- single full-width output projection (K = D, one MXU push) ---
    attn_out = jnp.dot(ctx.astype(jnp.bfloat16), wd_ref[...],
                       preferred_element_type=jnp.float32) + bd

    def layer_norm(inp, gamma, beta):
        mu = jnp.mean(inp, axis=-1, keepdims=True)
        xc = inp - mu
        var = jnp.mean(xc * xc, axis=-1, keepdims=True)
        return xc * jax.lax.rsqrt(var + 1e-5) * gamma + beta

    y = layer_norm(x + attn_out, g1, be1)             # (S, D) f32
    y_bf = y.astype(jnp.bfloat16)

    # --- FFN, chunked over d_ff to cap peak activation VMEM ---
    d_ff = w1_ref.shape[1]
    chunk = d_ff // n_ff_chunks
    ffn = jnp.zeros((S, D), jnp.float32)
    for c in range(n_ff_chunks):                      # static unroll
        lo = c * chunk
        h1 = jnp.dot(y_bf, w1_ref[:, lo:lo + chunk],
                     preferred_element_type=jnp.float32) + b1[lo:lo + chunk]
        h1 = jnp.maximum(h1, 0.0)
        ffn = ffn + jnp.dot(h1.astype(jnp.bfloat16), w2_ref[lo:lo + chunk, :],
                            preferred_element_type=jnp.float32)
    ffn = ffn + b2

    out = layer_norm(y + ffn, g2, be2)
    act_ref[...] = out                                # carry to next layer

    @pl.when(l == n_layers - 1)
    def _():
        o_ref[...] = out.astype(o_ref.dtype)


def prep_params(params_list, num_heads):
    """Stack all layers on a leading axis, pre-transpose weights to (in, out),
    cast to bf16, fold the softmax scale into wq/bq, pack tiny params."""
    bf = jnp.bfloat16
    d_model = params_list[0]["wq"].shape[0]
    depth = d_model // num_heads
    scale = 1.0 / (depth ** 0.5)
    wqkv, wd, w1, w2, p_d, p_f = [], [], [], [], [], []
    for p in params_list:
        wqkv.append(jnp.concatenate(
            [p["wq"].T * scale, p["wk"].T, p["wv"].T], axis=1).astype(bf))
        wd.append(p["wd"].T.astype(bf))
        w1.append(p["w1"].T.astype(bf))
        w2.append(p["w2"].T.astype(bf))
        p_d.append(jnp.stack([
            p["bq"][0] * scale, p["bk"][0], p["bv"][0], p["bd"][0],
            p["g1"][0], p["be1"][0], p["b2"][0], p["g2"][0], p["be2"][0]]))
        p_f.append(p["b1"])                           # (1, d_ff)
    return dict(
        wqkv=jnp.stack(wqkv),                         # (L, D, 3D) bf16
        wd=jnp.stack(wd),                             # (L, D, D) bf16
        w1=jnp.stack(w1),                             # (L, D, d_ff) bf16
        w2=jnp.stack(w2),                             # (L, d_ff, D) bf16
        pd=jnp.stack(p_d),                            # (L, 9, D) f32
        pf=jnp.stack(p_f),                            # (L, 1, d_ff) f32
    )


def transformer_encoder(x, prepped, num_heads, *, ff_chunk_target=1024):
    B, S, D = x.shape
    L = prepped["wqkv"].shape[0]
    d_ff = prepped["w1"].shape[2]
    assert D % num_heads == 0

    n_ff_chunks = max(1, d_ff // ff_chunk_target)
    while d_ff % n_ff_chunks:
        n_ff_chunks -= 1

    # VMEM budget: double-buffered per-layer weights + packed params + x/out
    # blocks + transients, clamped to 85% of physical VMEM (headroom on v7x,
    # > 64 MiB usable on v5e/v6e).
    weight_bytes = 2 * (D * 3 * D + D * D + 2 * D * d_ff)          # bf16, one layer
    param_bytes = 4 * (9 * D + d_ff)
    transient_bytes = 4 * (6 * S * D + num_heads * S * S + S * (d_ff // n_ff_chunks))
    needed = 2 * (weight_bytes + param_bytes) + 4 * 4 * S * D + transient_bytes + (4 << 20)
    try:
        cap = int(pltpu.get_tpu_info().vmem_capacity_bytes)
    except Exception:  # noqa: BLE001 - info query is best-effort
        cap = 64 << 20
    vmem_limit = int(min(max(needed, 32 << 20), int(cap * 0.85)))

    kernel = functools.partial(encoder_kernel, num_heads=num_heads,
                               n_ff_chunks=n_ff_chunks)
    return pl.pallas_call(
        kernel,
        out_shape=jax.ShapeDtypeStruct((B, S, D), x.dtype),
        grid=(B, L),
        in_specs=[
            pl.BlockSpec((None, S, D), lambda b, l: (b, 0, 0)),        # x
            pl.BlockSpec((None, D, 3 * D), lambda b, l: (l, 0, 0)),    # wqkv
            pl.BlockSpec((None, D, D), lambda b, l: (l, 0, 0)),        # wd
            pl.BlockSpec((None, D, d_ff), lambda b, l: (l, 0, 0)),     # w1
            pl.BlockSpec((None, d_ff, D), lambda b, l: (l, 0, 0)),     # w2
            pl.BlockSpec((None, 9, D), lambda b, l: (l, 0, 0)),        # packed D-wide params
            pl.BlockSpec((None, 1, d_ff), lambda b, l: (l, 0, 0)),     # b1
        ],
        out_specs=pl.BlockSpec((None, S, D), lambda b, l: (b, 0, 0)),
        scratch_shapes=[pltpu.VMEM((S, D), jnp.float32)],              # resident activation
        compiler_params=pltpu.CompilerParams(
            dimension_semantics=("parallel", "arbitrary"),
            vmem_limit_bytes=vmem_limit,
        ),
    )(x, prepped["wqkv"], prepped["wd"], prepped["w1"], prepped["w2"],
      prepped["pd"], prepped["pf"])


# --------------------------- pure-JAX reference ----------------------------
def reference_layer(x, p, num_heads):
    B, S, D = x.shape
    depth = D // num_heads

    def lin(inp, w, b):
        return inp @ w.T + b[0]

    q = lin(x, p["wq"], p["bq"]).reshape(B, S, num_heads, depth).transpose(0, 2, 1, 3)
    k = lin(x, p["wk"], p["bk"]).reshape(B, S, num_heads, depth).transpose(0, 2, 1, 3)
    v = lin(x, p["wv"], p["bv"]).reshape(B, S, num_heads, depth).transpose(0, 2, 1, 3)
    qk = jnp.einsum("bhqd,bhkd->bhqk", q, k) / (depth ** 0.5)
    attn = jax.nn.softmax(qk, axis=-1)
    out = jnp.einsum("bhqk,bhkd->bhqd", attn, v).transpose(0, 2, 1, 3).reshape(B, S, D)
    attn_out = lin(out, p["wd"], p["bd"])

    def ln(inp, g, b):
        mu = jnp.mean(inp, -1, keepdims=True)
        var = jnp.mean((inp - mu) ** 2, -1, keepdims=True)
        return (inp - mu) / jnp.sqrt(var + 1e-5) * g[0] + b[0]

    y = ln(x + attn_out, p["g1"], p["be1"])
    ffn = lin(jnp.maximum(lin(y, p["w1"], p["b1"]), 0.0), p["w2"], p["b2"])
    return ln(y + ffn, p["g2"], p["be2"])


def init_params(key, d_model, d_ff):
    ks = jax.random.split(key, 12)
    s = 0.05
    return {
        "wq": jax.random.normal(ks[0], (d_model, d_model), jnp.float32) * s,
        "bq": jax.random.normal(ks[1], (1, d_model), jnp.float32) * s,
        "wk": jax.random.normal(ks[2], (d_model, d_model), jnp.float32) * s,
        "bk": jax.random.normal(ks[3], (1, d_model), jnp.float32) * s,
        "wv": jax.random.normal(ks[4], (d_model, d_model), jnp.float32) * s,
        "bv": jax.random.normal(ks[5], (1, d_model), jnp.float32) * s,
        "wd": jax.random.normal(ks[6], (d_model, d_model), jnp.float32) * s,
        "bd": jax.random.normal(ks[7], (1, d_model), jnp.float32) * s,
        "g1": jnp.ones((1, d_model), jnp.float32),
        "be1": jnp.zeros((1, d_model), jnp.float32),
        "w1": jax.random.normal(ks[8], (d_ff, d_model), jnp.float32) * s,
        "b1": jax.random.normal(ks[9], (1, d_ff), jnp.float32) * s,
        "w2": jax.random.normal(ks[10], (d_model, d_ff), jnp.float32) * s,
        "b2": jax.random.normal(ks[11], (1, d_model), jnp.float32) * s,
        "g2": jnp.ones((1, d_model), jnp.float32),
        "be2": jnp.zeros((1, d_model), jnp.float32),
    }


if __name__ == "__main__":
    NUM_LAYERS, B, S, D, H, DFF = 2, 2, 8, 32, 4, 64
    key = jax.random.PRNGKey(0)
    keys = jax.random.split(key, NUM_LAYERS + 1)
    x = jax.random.normal(keys[0], (B, S, D), jnp.float32)
    params_list = [init_params(k, D, DFF) for k in keys[1:]]

    ref = x
    for p in params_list:
        ref = reference_layer(ref, p, H)

    prepped = prep_params(params_list, H)
    out = jax.block_until_ready(transformer_encoder(x, prepped, H))

    assert out.shape == (B, S, D)
    max_err = float(jnp.max(jnp.abs(out - ref)))
    assert jnp.allclose(out, ref, atol=2e-2, rtol=2e-2), f"max abs err {max_err}"
    print("KERNEL_OK")
</pallas_src>

<mosaic_0001>
module attributes {stable_mosaic.version = 11 : i64} {
  func.func @encoder_kernel(%arg0: i32, %arg1: i32, %arg2: memref<1x8x32xf32, #tpu.memory_space<vmem>>, %arg3: memref<1x32x96xbf16, #tpu.memory_space<vmem>>, %arg4: memref<1x32x32xbf16, #tpu.memory_space<vmem>>, %arg5: memref<1x32x64xbf16, #tpu.memory_space<vmem>>, %arg6: memref<1x64x32xbf16, #tpu.memory_space<vmem>>, %arg7: memref<1x9x32xf32, #tpu.memory_space<vmem>>, %arg8: memref<1x1x64xf32, #tpu.memory_space<vmem>>, %arg9: memref<1x8x32xf32, #tpu.memory_space<vmem>>, %arg10: memref<8x32xf32, #tpu.memory_space<vmem>>) attributes {dimension_semantics = [#tpu.dimension_semantics<parallel>, #tpu.dimension_semantics<arbitrary>], iteration_bounds = array<i64: 2, 2>, scalar_prefetch = 0 : i64, scratch_operands = 1 : i64, tpu.core_type = #tpu.core_type<tc>, window_params = [{transform_indices = @transform_0, window_bounds = array<i64: 1, 8, 32>}, {transform_indices = @transform_1, window_bounds = array<i64: 1, 32, 96>}, {transform_indices = @transform_2, window_bounds = array<i64: 1, 32, 32>}, {transform_indices = @transform_3, window_bounds = array<i64: 1, 32, 64>}, {transform_indices = @transform_4, window_bounds = array<i64: 1, 64, 32>}, {transform_indices = @transform_5, window_bounds = array<i64: 1, 9, 32>}, {transform_indices = @transform_6, window_bounds = array<i64: 1, 1, 64>}, {transform_indices = @transform_7, window_bounds = array<i64: 1, 8, 32>}]} {
    %c0_i32 = arith.constant 0 : i32
    %0 = arith.cmpi eq, %arg1, %c0_i32 : i32
    %1 = arith.extui %0 : i1 to i32
    %c0_i32_0 = arith.constant 0 : i32
    %2 = arith.cmpi ne, %1, %c0_i32_0 : i32
    scf.if %2 {
      %c0_42 = arith.constant 0 : index
      %c0_43 = arith.constant 0 : index
      %c0_44 = arith.constant 0 : index
      %141 = vector.load %arg2[%c0_42, %c0_43, %c0_44] : memref<1x8x32xf32, #tpu.memory_space<vmem>>, vector<1x8x32xf32>
      %142 = vector.shape_cast %141 : vector<1x8x32xf32> to vector<8x32xf32>
      %c0_45 = arith.constant 0 : index
      %c0_46 = arith.constant 0 : index
      %143 = vector.load %arg10[%c0_45, %c0_46] : memref<8x32xf32, #tpu.memory_space<vmem>>, vector<8x32xf32>
      tpu.vector_store %arg10[%c0_45, %c0_46], %142 {strides = array<i32>} : memref<8x32xf32, #tpu.memory_space<vmem>>, vector<8x32xf32>,
    } else {
    }
    %c0 = arith.constant 0 : index
    %c0_1 = arith.constant 0 : index
    %3 = vector.load %arg10[%c0, %c0_1] : memref<8x32xf32, #tpu.memory_space<vmem>>, vector<8x32xf32>
    %c0_2 = arith.constant 0 : index
    %c0_3 = arith.constant 0 : index
    %c0_4 = arith.constant 0 : index
    %4 = vector.load %arg7[%c0_2, %c0_3, %c0_4] : memref<1x9x32xf32, #tpu.memory_space<vmem>>, vector<1x9x32xf32>
    %5 = vector.shape_cast %4 : vector<1x9x32xf32> to vector<9x32xf32>
    %6 = vector.extract_strided_slice %5 {offsets = [0, 0], sizes = [1, 32], strides = [1, 1]} : vector<9x32xf32> to vector<1x32xf32>
    %7 = vector.shape_cast %6 : vector<1x32xf32> to vector<32xf32>
    %8 = vector.extract_strided_slice %5 {offsets = [1, 0], sizes = [1, 32], strides = [1, 1]} : vector<9x32xf32> to vector<1x32xf32>
    %9 = vector.shape_cast %8 : vector<1x32xf32> to vector<32xf32>
    %10 = vector.extract_strided_slice %5 {offsets = [2, 0], sizes = [1, 32], strides = [1, 1]} : vector<9x32xf32> to vector<1x32xf32>
    %11 = vector.shape_cast %10 : vector<1x32xf32> to vector<32xf32>
    %12 = vector.extract_strided_slice %5 {offsets = [3, 0], sizes = [1, 32], strides = [1, 1]} : vector<9x32xf32> to vector<1x32xf32>
    %13 = vector.shape_cast %12 : vector<1x32xf32> to vector<32xf32>
    %14 = vector.extract_strided_slice %5 {offsets = [4, 0], sizes = [1, 32], strides = [1, 1]} : vector<9x32xf32> to vector<1x32xf32>
    %15 = vector.shape_cast %14 : vector<1x32xf32> to vector<32xf32>
    %16 = vector.extract_strided_slice %5 {offsets = [5, 0], sizes = [1, 32], strides = [1, 1]} : vector<9x32xf32> to vector<1x32xf32>
    %17 = vector.shape_cast %16 : vector<1x32xf32> to vector<32xf32>
    %18 = vector.extract_strided_slice %5 {offsets = [6, 0], sizes = [1, 32], strides = [1, 1]} : vector<9x32xf32> to vector<1x32xf32>
    %19 = vector.shape_cast %18 : vector<1x32xf32> to vector<32xf32>
    %20 = vector.extract_strided_slice %5 {offsets = [7, 0], sizes = [1, 32], strides = [1, 1]} : vector<9x32xf32> to vector<1x32xf32>
    %21 = vector.shape_cast %20 : vector<1x32xf32> to vector<32xf32>
    %22 = vector.extract_strided_slice %5 {offsets = [8, 0], sizes = [1, 32], strides = [1, 1]} : vector<9x32xf32> to vector<1x32xf32>
    %23 = vector.shape_cast %22 : vector<1x32xf32> to vector<32xf32>
    %c0_5 = arith.constant 0 : index
    %c0_6 = arith.constant 0 : index
    %c0_7 = arith.constant 0 : index
    %24 = vector.load %arg8[%c0_5, %c0_6, %c0_7] : memref<1x1x64xf32, #tpu.memory_space<vmem>>, vector<1x1x64xf32>
    %25 = vector.shape_cast %24 : vector<1x1x64xf32> to vector<64xf32>
    %26 = arith.truncf %3 : vector<8x32xf32> to vector<8x32xbf16>
    %c0_8 = arith.constant 0 : index
    %c0_9 = arith.constant 0 : index
    %c0_10 = arith.constant 0 : index
    %27 = vector.load %arg3[%c0_8, %c0_9, %c0_10] : memref<1x32x96xbf16, #tpu.memory_space<vmem>>, vector<1x32x96xbf16>
    %28 = vector.shape_cast %27 : vector<1x32x96xbf16> to vector<32x96xbf16>
    %cst = arith.constant dense<0.000000e+00> : vector<8x96xf32>
    %29 = tpu.matmul %26, %28, %cst {dimension_numbers = #tpu.dot_dimension_numbers<[1], [0], [0], [1], [0, 0, 1, 1], [], []>} : vector<8x32xbf16>, vector<32x96xbf16>, vector<8x96xf32> -> vector<8x96xf32>
    %30 = vector.extract_strided_slice %29 {offsets = [0, 0], sizes = [8, 32], strides = [1, 1]} : vector<8x96xf32> to vector<8x32xf32>
    %31 = vector.shape_cast %7 : vector<32xf32> to vector<1x32xf32>
    %32 = vector.broadcast %31 : vector<1x32xf32> to vector<8x32xf32>
    %33 = arith.addf %30, %32 : vector<8x32xf32>
    %34 = vector.extract_strided_slice %29 {offsets = [0, 32], sizes = [8, 32], strides = [1, 1]} : vector<8x96xf32> to vector<8x32xf32>
    %35 = vector.shape_cast %9 : vector<32xf32> to vector<1x32xf32>
    %36 = vector.broadcast %35 : vector<1x32xf32> to vector<8x32xf32>
    %37 = arith.addf %34, %36 : vector<8x32xf32>
    %38 = vector.extract_strided_slice %29 {offsets = [0, 64], sizes = [8, 32], strides = [1, 1]} : vector<8x96xf32> to vector<8x32xf32>
    %39 = vector.shape_cast %11 : vector<32xf32> to vector<1x32xf32>
    %40 = vector.broadcast %39 : vector<1x32xf32> to vector<8x32xf32>
    %41 = arith.addf %38, %40 : vector<8x32xf32>
    %42 = vector.shape_cast %33 : vector<8x32xf32> to vector<8x4x8xf32>
    %43 = tpu.transpose %42, [1, 0, 2] : vector<8x4x8xf32> -> vector<4x8x8xf32>
    %44 = arith.truncf %43 : vector<4x8x8xf32> to vector<4x8x8xbf16>
    %45 = vector.shape_cast %37 : vector<8x32xf32> to vector<8x4x8xf32>
    %46 = tpu.transpose %45, [1, 0, 2] : vector<8x4x8xf32> -> vector<4x8x8xf32>
    %47 = arith.truncf %46 : vector<4x8x8xf32> to vector<4x8x8xbf16>
    %48 = vector.shape_cast %41 : vector<8x32xf32> to vector<8x4x8xf32>
    %49 = tpu.transpose %48, [1, 0, 2] : vector<8x4x8xf32> -> vector<4x8x8xf32>
    %50 = arith.truncf %49 : vector<4x8x8xf32> to vector<4x8x8xbf16>
    "tpu.trace_start"() <{level = 10 : i32, message = "hqd,hkd->hqk"}> : () -> ()
    %cst_11 = arith.constant dense<0.000000e+00> : vector<4x8x8xf32>
    %51 = tpu.matmul %44, %47, %cst_11 {dimension_numbers = #tpu.dot_dimension_numbers<[2], [2], [1], [1], [0, 0, 0, 1, 1, 1], [0], [0]>} : vector<4x8x8xbf16>, vector<4x8x8xbf16>, vector<4x8x8xf32> -> vector<4x8x8xf32>
    "tpu.trace_stop"() : () -> ()
    %cst_12 = arith.constant dense<0xFF800000> : vector<4x8xf32>
    %52 = vector.multi_reduction <maximumf>, %51, %cst_12 [2] : vector<4x8x8xf32> to vector<4x8xf32>
    %53 = vector.shape_cast %52 : vector<4x8xf32> to vector<4x8x1xf32>
    %54 = vector.broadcast %53 : vector<4x8x1xf32> to vector<4x8x8xf32>
    %55 = arith.subf %51, %54 : vector<4x8x8xf32>
    %56 = math.exp %55 : vector<4x8x8xf32>
    %cst_13 = arith.constant dense<0.000000e+00> : vector<4x8xf32>
    %57 = vector.multi_reduction <add>, %56, %cst_13 [2] : vector<4x8x8xf32> to vector<4x8xf32>
    %58 = vector.shape_cast %57 : vector<4x8xf32> to vector<4x8x1xf32>
    %59 = tpu.reciprocal %58 {approx = true} : vector<4x8x1xf32> -> vector<4x8x1xf32>
    %60 = vector.broadcast %59 : vector<4x8x1xf32> to vector<4x8x8xf32>
    %61 = arith.mulf %56, %60 : vector<4x8x8xf32>
    %62 = arith.truncf %61 : vector<4x8x8xf32> to vector<4x8x8xbf16>
    "tpu.trace_start"() <{level = 10 : i32, message = "hqk,hkd->hqd"}> : () -> ()
    %cst_14 = arith.constant dense<0.000000e+00> : vector<4x8x8xf32>
    %63 = tpu.matmul %62, %50, %cst_14 {dimension_numbers = #tpu.dot_dimension_numbers<[2], [1], [1], [2], [0, 0, 0, 1, 1, 2], [0], [0]>} : vector<4x8x8xbf16>, vector<4x8x8xbf16>, vector<4x8x8xf32> -> vector<4x8x8xf32>
    "tpu.trace_stop"() : () -> ()
    %64 = tpu.transpose %63, [1, 0, 2] : vector<4x8x8xf32> -> vector<8x4x8xf32>
    %65 = vector.shape_cast %64 : vector<8x4x8xf32> to vector<8x32xf32>
    %66 = arith.truncf %65 : vector<8x32xf32> to vector<8x32xbf16>
    %c0_15 = arith.constant 0 : index
    %c0_16 = arith.constant 0 : index
    %c0_17 = arith.constant 0 : index
    %67 = vector.load %arg4[%c0_15, %c0_16, %c0_17] : memref<1x32x32xbf16, #tpu.memory_space<vmem>>, vector<1x32x32xbf16>
    %68 = vector.shape_cast %67 : vector<1x32x32xbf16> to vector<32x32xbf16>
    %cst_18 = arith.constant dense<0.000000e+00> : vector<8x32xf32>
    %69 = tpu.matmul %66, %68, %cst_18 {dimension_numbers = #tpu.dot_dimension_numbers<[1], [0], [0], [1], [0, 0, 1, 1], [], []>} : vector<8x32xbf16>, vector<32x32xbf16>, vector<8x32xf32> -> vector<8x32xf32>
    %70 = vector.shape_cast %13 : vector<32xf32> to vector<1x32xf32>
    %71 = vector.broadcast %70 : vector<1x32xf32> to vector<8x32xf32>
    %72 = arith.addf %69, %71 : vector<8x32xf32>
    %73 = arith.addf %3, %72 : vector<8x32xf32>
    %cst_19 = arith.constant dense<0.000000e+00> : vector<8xf32>
    %74 = vector.multi_reduction <add>, %73, %cst_19 [1] : vector<8x32xf32> to vector<8xf32>
    %75 = vector.shape_cast %74 : vector<8xf32> to vector<8x1xf32>
    %cst_20 = arith.constant 3.200000e+01 : f32
    %76 = vector.broadcast %cst_20 : f32 to vector<8x1xf32>
    %77 = arith.divf %75, %76 : vector<8x1xf32>
    %78 = vector.broadcast %77 : vector<8x1xf32> to vector<8x32xf32>
    %79 = arith.subf %73, %78 : vector<8x32xf32>
    %80 = arith.mulf %79, %79 : vector<8x32xf32>
    %cst_21 = arith.constant dense<0.000000e+00> : vector<8xf32>
    %81 = vector.multi_reduction <add>, %80, %cst_21 [1] : vector<8x32xf32> to vector<8xf32>
    %82 = vector.shape_cast %81 : vector<8xf32> to vector<8x1xf32>
    %cst_22 = arith.constant 3.200000e+01 : f32
    %83 = vector.broadcast %cst_22 : f32 to vector<8x1xf32>
    %84 = arith.divf %82, %83 : vector<8x1xf32>
    %cst_23 = arith.constant 9.99999974E-6 : f32
    %85 = vector.broadcast %cst_23 : f32 to vector<8x1xf32>
    %86 = arith.addf %84, %85 : vector<8x1xf32>
    %87 = math.rsqrt %86 : vector<8x1xf32>
    %88 = vector.broadcast %87 : vector<8x1xf32> to vector<8x32xf32>
    %89 = arith.mulf %79, %88 : vector<8x32xf32>
    %90 = vector.shape_cast %15 : vector<32xf32> to vector<1x32xf32>
    %91 = vector.broadcast %90 : vector<1x32xf32> to vector<8x32xf32>
    %92 = arith.mulf %89, %91 : vector<8x32xf32>
    %93 = vector.shape_cast %17 : vector<32xf32> to vector<1x32xf32>
    %94 = vector.broadcast %93 : vector<1x32xf32> to vector<8x32xf32>
    %95 = arith.addf %92, %94 : vector<8x32xf32>
    %96 = arith.truncf %95 : vector<8x32xf32> to vector<8x32xbf16>
    %cst_24 = arith.constant 0.000000e+00 : f32
    %97 = vector.broadcast %cst_24 : f32 to vector<8x32xf32>
    %c0_25 = arith.constant 0 : index
    %c0_26 = arith.constant 0 : index
    %c0_27 = arith.constant 0 : index
    %98 = vector.load %arg5[%c0_25, %c0_26, %c0_27] : memref<1x32x64xbf16, #tpu.memory_space<vmem>>, vector<1x32x64xbf16>
    %99 = vector.shape_cast %98 : vector<1x32x64xbf16> to vector<32x64xbf16>
    %cst_28 = arith.constant dense<0.000000e+00> : vector<8x64xf32>
    %100 = tpu.matmul %96, %99, %cst_28 {dimension_numbers = #tpu.dot_dimension_numbers<[1], [0], [0], [1], [0, 0, 1, 1], [], []>} : vector<8x32xbf16>, vector<32x64xbf16>, vector<8x64xf32> -> vector<8x64xf32>
    %101 = vector.shape_cast %25 : vector<64xf32> to vector<1x64xf32>
    %102 = vector.broadcast %101 : vector<1x64xf32> to vector<8x64xf32>
    %103 = arith.addf %100, %102 : vector<8x64xf32>
    %cst_29 = arith.constant 0.000000e+00 : f32
    %104 = vector.broadcast %cst_29 : f32 to vector<8x64xf32>
    %105 = arith.maximumf %103, %104 : vector<8x64xf32>
    %106 = arith.truncf %105 : vector<8x64xf32> to vector<8x64xbf16>
    %c0_30 = arith.constant 0 : index
    %c0_31 = arith.constant 0 : index
    %c0_32 = arith.constant 0 : index
    %107 = vector.load %arg6[%c0_30, %c0_31, %c0_32] : memref<1x64x32xbf16, #tpu.memory_space<vmem>>, vector<1x64x32xbf16>
    %108 = vector.shape_cast %107 : vector<1x64x32xbf16> to vector<64x32xbf16>
    %cst_33 = arith.constant dense<0.000000e+00> : vector<8x32xf32>
    %109 = tpu.matmul %106, %108, %cst_33 {dimension_numbers = #tpu.dot_dimension_numbers<[1], [0], [0], [1], [0, 0, 1, 1], [], []>} : vector<8x64xbf16>, vector<64x32xbf16>, vector<8x32xf32> -> vector<8x32xf32>
    %110 = arith.addf %97, %109 : vector<8x32xf32>
    %111 = vector.shape_cast %19 : vector<32xf32> to vector<1x32xf32>
    %112 = vector.broadcast %111 : vector<1x32xf32> to vector<8x32xf32>
    %113 = arith.addf %110, %112 : vector<8x32xf32>
    %114 = arith.addf %95, %113 : vector<8x32xf32>
    %cst_34 = arith.constant dense<0.000000e+00> : vector<8xf32>
    %115 = vector.multi_reduction <add>, %114, %cst_34 [1] : vector<8x32xf32> to vector<8xf32>
    %116 = vector.shape_cast %115 : vector<8xf32> to vector<8x1xf32>
    %cst_35 = arith.constant 3.200000e+01 : f32
    %117 = vector.broadcast %cst_35 : f32 to vector<8x1xf32>
    %118 = arith.divf %116, %117 : vector<8x1xf32>
    %119 = vector.broadcast %118 : vector<8x1xf32> to vector<8x32xf32>
    %120 = arith.subf %114, %119 : vector<8x32xf32>
    %121 = arith.mulf %120, %120 : vector<8x32xf32>
    %cst_36 = arith.constant dense<0.000000e+00> : vector<8xf32>
    %122 = vector.multi_reduction <add>, %121, %cst_36 [1] : vector<8x32xf32> to vector<8xf32>
    %123 = vector.shape_cast %122 : vector<8xf32> to vector<8x1xf32>
    %cst_37 = arith.constant 3.200000e+01 : f32
    %124 = vector.broadcast %cst_37 : f32 to vector<8x1xf32>
    %125 = arith.divf %123, %124 : vector<8x1xf32>
    %cst_38 = arith.constant 9.99999974E-6 : f32
    %126 = vector.broadcast %cst_38 : f32 to vector<8x1xf32>
    %127 = arith.addf %125, %126 : vector<8x1xf32>
    %128 = math.rsqrt %127 : vector<8x1xf32>
    %129 = vector.broadcast %128 : vector<8x1xf32> to vector<8x32xf32>
    %130 = arith.mulf %120, %129 : vector<8x32xf32>
    %131 = vector.shape_cast %21 : vector<32xf32> to vector<1x32xf32>
    %132 = vector.broadcast %131 : vector<1x32xf32> to vector<8x32xf32>
    %133 = arith.mulf %130, %132 : vector<8x32xf32>
    %134 = vector.shape_cast %23 : vector<32xf32> to vector<1x32xf32>
    %135 = vector.broadcast %134 : vector<1x32xf32> to vector<8x32xf32>
    %136 = arith.addf %133, %135 : vector<8x32xf32>
    %c0_39 = arith.constant 0 : index
    %c0_40 = arith.constant 0 : index
    %137 = vector.load %arg10[%c0_39, %c0_40] : memref<8x32xf32, #tpu.memory_space<vmem>>, vector<8x32xf32>
    tpu.vector_store %arg10[%c0_39, %c0_40], %136 {strides = array<i32>} : memref<8x32xf32, #tpu.memory_space<vmem>>, vector<8x32xf32>,
    %c1_i32 = arith.constant 1 : i32
    %138 = arith.cmpi eq, %arg1, %c1_i32 : i32
    %139 = arith.extui %138 : i1 to i32
    %c0_i32_41 = arith.constant 0 : i32
    %140 = arith.cmpi ne, %139, %c0_i32_41 : i32
    scf.if %140 {
      %c0_42 = arith.constant 0 : index
      %c0_43 = arith.constant 0 : index
      %c0_44 = arith.constant 0 : index
      %141 = vector.load %arg9[%c0_42, %c0_43, %c0_44] : memref<1x8x32xf32, #tpu.memory_space<vmem>>, vector<1x8x32xf32>
      %142 = vector.shape_cast %141 : vector<1x8x32xf32> to vector<8x32xf32>
      %143 = vector.shape_cast %136 : vector<8x32xf32> to vector<1x8x32xf32>
      tpu.vector_store %arg9[%c0_42, %c0_43, %c0_44], %143 {strides = array<i32>} : memref<1x8x32xf32, #tpu.memory_space<vmem>>, vector<1x8x32xf32>,
    } else {
    }
    return
  }
  func.func @transform_0(%arg0: i32, %arg1: i32) -> (i32, i32, i32) {
    %c0_i32 = arith.constant 0 : i32
    %c0_i32_0 = arith.constant 0 : i32
    %c0_i32_1 = arith.constant 0 : i32
    return %arg0, %c0_i32, %c0_i32_0 : i32, i32, i32
  }
  func.func @transform_1(%arg0: i32, %arg1: i32) -> (i32, i32, i32) {
    %c0_i32 = arith.constant 0 : i32
    %c0_i32_0 = arith.constant 0 : i32
    %c0_i32_1 = arith.constant 0 : i32
    return %arg1, %c0_i32, %c0_i32_0 : i32, i32, i32
  }
  func.func @transform_2(%arg0: i32, %arg1: i32) -> (i32, i32, i32) {
    %c0_i32 = arith.constant 0 : i32
    %c0_i32_0 = arith.constant 0 : i32
    %c0_i32_1 = arith.constant 0 : i32
    return %arg1, %c0_i32, %c0_i32_0 : i32, i32, i32
  }
  func.func @transform_3(%arg0: i32, %arg1: i32) -> (i32, i32, i32) {
    %c0_i32 = arith.constant 0 : i32
    %c0_i32_0 = arith.constant 0 : i32
    %c0_i32_1 = arith.constant 0 : i32
    return %arg1, %c0_i32, %c0_i32_0 : i32, i32, i32
  }
  func.func @transform_4(%arg0: i32, %arg1: i32) -> (i32, i32, i32) {
    %c0_i32 = arith.constant 0 : i32
    %c0_i32_0 = arith.constant 0 : i32
    %c0_i32_1 = arith.constant 0 : i32
    return %arg1, %c0_i32, %c0_i32_0 : i32, i32, i32
  }
  func.func @transform_5(%arg0: i32, %arg1: i32) -> (i32, i32, i32) {
    %c0_i32 = arith.constant 0 : i32
    %c0_i32_0 = arith.constant 0 : i32
    %c0_i32_1 = arith.constant 0 : i32
    return %arg1, %c0_i32, %c0_i32_0 : i32, i32, i32
  }
  func.func @transform_6(%arg0: i32, %arg1: i32) -> (i32, i32, i32) {
    %c0_i32 = arith.constant 0 : i32
    %c0_i32_0 = arith.constant 0 : i32
    %c0_i32_1 = arith.constant 0 : i32
    return %arg1, %c0_i32, %c0_i32_0 : i32, i32, i32
  }
  func.func @transform_7(%arg0: i32, %arg1: i32) -> (i32, i32, i32) {
    %c0_i32 = arith.constant 0 : i32
    %c0_i32_0 = arith.constant 0 : i32
    %c0_i32_1 = arith.constant 0 : i32
    return %arg0, %c0_i32, %c0_i32_0 : i32, i32, i32
  }
}

</mosaic_0001>

<llo_original>
// kernel: tpu_custom_call.1
$region0: #{tpu_custom_call.1}
  #allocation0 [shape = 'u32[]', space=smem, size = 0x4, offset = 0x4, fixed_abs, tag = 'smem constant byte address 0x4 - core index']
  #allocation1 [shape = 'u32[144,128]{1,0:T(1,128)}', space=vmem, size = 0x12000, scoped, tag = 'internal scratch']
  #allocation2 [shape = 'f32[8,32]{1,0:T(8,128)}', space=vmem, size = 0x1000, scoped, tag = 'scratch operand']
  %s0 = inlined_call_operand.vmem [shape: f32[2,8,32], index: 0, kind: input, shape index: {}]
  %s1 = inlined_call_operand.vmem [shape: bf16[2,32,96], index: 1, kind: input, shape index: {}]
  %s2 = inlined_call_operand.vmem [shape: bf16[2,32,32], index: 2, kind: input, shape index: {}]
  %s3 = inlined_call_operand.vmem [shape: bf16[2,32,64], index: 3, kind: input, shape index: {}]
  %s4 = inlined_call_operand.vmem [shape: bf16[2,64,32], index: 4, kind: input, shape index: {}]
  %s5 = inlined_call_operand.vmem [shape: f32[2,9,32], index: 5, kind: input, shape index: {}]
  %s6 = inlined_call_operand.vmem [shape: f32[2,1,64], index: 6, kind: input, shape index: {}]
  %s7 = inlined_call_operand.hbm [shape: f32[2,8,32], index: 7, kind: output, shape index: {}]
  %s8 = sld [smem:[#allocation0]]
  $region69: #{tpu_custom_call.1} parent=0
    _
  %s10 = ssub.s32 1, %s8
  %s11 = scalar_select 0, %s10, %s8
  $region1: #{tpu_custom_call.1} parent=0
    #allocation3 [shape = 'u8[8192]{0}', space=vmem, size = 0x2000, scoped, tag = 'output window, operand 0']
    #allocation4 [shape = 's32[2]{0}', space=sflag, size = 0x8, scoped, tag = 'scoped memory for tpu_custom_call.1']
    %12 = vsyncpa [#allocation4], 0
    %s13 = scalar_lea.sflag [#allocation4], 1
    %14 = vsyncpa %s13, 0
    loop: start=0, step=1, limit=6
    $region2: #{tpu_custom_call.1} parent=1 // loop_pre_header
      _
    $region3: #{tpu_custom_call.1} parent=1 // loop_header
      %s16 = sphi 0, %s20
      %p17 = scmp.ge.s32.totalorder %s16, 6
      %s23 = sphi 0, %s35
      %s24 = sphi 0, %s31
      %s25 = sphi 0, %s23
      %s26 = sphi 0, %s24
      %s27 = sphi 0, %s25
      %s28 = sphi 0, %s26
      %s38 = sphi 0, %s40
      %s41 = sphi 0, %s38
      %s42 = sphi 0, %s41
      %s58 = sphi 0, %s42
      %s64 = sphi 0, %s66
      %s67 = sphi 0, %s64
      %s68 = sphi 0, %s67
      %s84 = sphi 0, %s68
      %s90 = sphi 0, %s92
      %s93 = sphi 0, %s90
      %s94 = sphi 0, %s93
      %s110 = sphi 0, %s94
      %s116 = sphi 0, %s118
      %s119 = sphi 0, %s116
      %s120 = sphi 0, %s119
      %s136 = sphi 0, %s120
      %s142 = sphi 0, %s144
      %s145 = sphi 0, %s142
      %s146 = sphi 0, %s145
      %s162 = sphi 0, %s146
      %s168 = sphi 0, %s170
      %s171 = sphi 0, %s168
      %s172 = sphi 0, %s171
      %s188 = sphi 0, %s172
      %s194 = sphi 0, %s196
      %s197 = sphi 0, %s194
      %s198 = sphi 0, %s197
      %s214 = sphi 0, %s198
      %s220 = sphi 0, %s222
      %s223 = sphi 0, %s220
      %s224 = sphi 0, %s223
      %s240 = sphi 0, %s224
    $region4: #{tpu_custom_call.1} parent=1 // loop_header_branch
      %19 = sbr.rel (%p17) target = $region8
    $region5: #{tpu_custom_call.1} parent=1 // loop_body
      %s21 = ssub.s32 %s16, 1
      %s22 = ssub.s32 %s16, 2
      %s29 = sadd.s32 1, %s24
      %p30 = scmp.ge.s32.totalorder %s29, 2
      %s31 = scalar_select %p30, 0, %s29
      %s32 = sadd.s32 1, %s23
      %s33 = scalar_select %p30, %s32, %s23
      %p34 = scmp.ge.s32.totalorder %s33, 2
      %s35 = scalar_select %p34, 0, %s33
      %s36 = ssub.s32 %s23, %s35
      %p37 = scmp.eq.s32.totalorder %s36, 0
      %s39 = sadd.s32 %s38, 1
      %s40 = scalar_select %p37, %s38, %s39
      %p43 = pneg %p37
      %p44 = scmp.eq.s32.totalorder %s16, 3
      %p45 = por %p43, %p44
      %p46 = scmp.ne.s32.totalorder %s38, %s41
      %p47 = scmp.eq.s32.totalorder %s16, 0
      %p48 = por %p46, %p47
      %p49 = scmp.ne.s32.totalorder %s38, %s41
      %p50 = scmp.eq.s32.totalorder %s21, 3
      %p51 = por %p49, %p50
      %p52 = scmp.ne.s32.totalorder %s41, %s42
      %p53 = scmp.eq.s32.totalorder %s21, 0
      %p54 = por %p52, %p53
      %p55 = scmp.ne.s32.totalorder %s41, %s42
      %p56 = scmp.eq.s32.totalorder %s22, 3
      %p57 = por %p55, %p56
      %p59 = scmp.ne.s32.totalorder %s42, %s58
      %p60 = scmp.eq.s32.totalorder %s22, 0
      %p61 = por %p59, %p60
      %s62 = ssub.s32 %s24, %s31
      %p63 = scmp.eq.s32.totalorder %s62, 0
      %s65 = sadd.s32 %s64, 1
      %s66 = scalar_select %p63, %s64, %s65
      %p69 = pneg %p63
      %p70 = scmp.eq.s32.totalorder %s16, 3
      %p71 = por %p69, %p70
      %p72 = scmp.ne.s32.totalorder %s64, %s67
      %p73 = scmp.eq.s32.totalorder %s16, 0
      %p74 = por %p72, %p73
      %p75 = scmp.ne.s32.totalorder %s64, %s67
      %p76 = scmp.eq.s32.totalorder %s21, 3
      %p77 = por %p75, %p76
      %p78 = scmp.ne.s32.totalorder %s67, %s68
      %p79 = scmp.eq.s32.totalorder %s21, 0
      %p80 = por %p78, %p79
      %p81 = scmp.ne.s32.totalorder %s67, %s68
      %p82 = scmp.eq.s32.totalorder %s22, 3
      %p83 = por %p81, %p82
      %p85 = scmp.ne.s32.totalorder %s68, %s84
      %p86 = scmp.eq.s32.totalorder %s22, 0
      %p87 = por %p85, %p86
      %s88 = ssub.s32 %s24, %s31
      %p89 = scmp.eq.s32.totalorder %s88, 0
      %s91 = sadd.s32 %s90, 1
      %s92 = scalar_select %p89, %s90, %s91
      %p95 = pneg %p89
      %p96 = scmp.eq.s32.totalorder %s16, 3
      %p97 = por %p95, %p96
      %p98 = scmp.ne.s32.totalorder %s90, %s93
      %p99 = scmp.eq.s32.totalorder %s16, 0
      %p100 = por %p98, %p99
      %p101 = scmp.ne.s32.totalorder %s90, %s93
      %p102 = scmp.eq.s32.totalorder %s21, 3
      %p103 = por %p101, %p102
      %p104 = scmp.ne.s32.totalorder %s93, %s94
      %p105 = scmp.eq.s32.totalorder %s21, 0
      %p106 = por %p104, %p105
      %p107 = scmp.ne.s32.totalorder %s93, %s94
      %p108 = scmp.eq.s32.totalorder %s22, 3
      %p109 = por %p107, %p108
      %p111 = scmp.ne.s32.totalorder %s94, %s110
      %p112 = scmp.eq.s32.totalorder %s22, 0
      %p113 = por %p111, %p112
      %s114 = ssub.s32 %s24, %s31
      %p115 = scmp.eq.s32.totalorder %s114, 0
      %s117 = sadd.s32 %s116, 1
      %s118 = scalar_select %p115, %s116, %s117
      %p121 = pneg %p115
      %p122 = scmp.eq.s32.totalorder %s16, 3
      %p123 = por %p121, %p122
      %p124 = scmp.ne.s32.totalorder %s116, %s119
      %p125 = scmp.eq.s32.totalorder %s16, 0
      %p126 = por %p124, %p125
      %p127 = scmp.ne.s32.totalorder %s116, %s119
      %p128 = scmp.eq.s32.totalorder %s21, 3
      %p129 = por %p127, %p128
      %p130 = scmp.ne.s32.totalorder %s119, %s120
      %p131 = scmp.eq.s32.totalorder %s21, 0
      %p132 = por %p130, %p131
      %p133 = scmp.ne.s32.totalorder %s119, %s120
      %p134 = scmp.eq.s32.totalorder %s22, 3
      %p135 = por %p133, %p134
      %p137 = scmp.ne.s32.totalorder %s120, %s136
      %p138 = scmp.eq.s32.totalorder %s22, 0
      %p139 = por %p137, %p138
      %s140 = ssub.s32 %s24, %s31
      %p141 = scmp.eq.s32.totalorder %s140, 0
      %s143 = sadd.s32 %s142, 1
      %s144 = scalar_select %p141, %s142, %s143
      %p147 = pneg %p141
      %p148 = scmp.eq.s32.totalorder %s16, 3
      %p149 = por %p147, %p148
      %p150 = scmp.ne.s32.totalorder %s142, %s145
      %p151 = scmp.eq.s32.totalorder %s16, 0
      %p152 = por %p150, %p151
      %p153 = scmp.ne.s32.totalorder %s142, %s145
      %p154 = scmp.eq.s32.totalorder %s21, 3
      %p155 = por %p153, %p154
      %p156 = scmp.ne.s32.totalorder %s145, %s146
      %p157 = scmp.eq.s32.totalorder %s21, 0
      %p158 = por %p156, %p157
      %p159 = scmp.ne.s32.totalorder %s145, %s146
      %p160 = scmp.eq.s32.totalorder %s22, 3
      %p161 = por %p159, %p160
      %p163 = scmp.ne.s32.totalorder %s146, %s162
      %p164 = scmp.eq.s32.totalorder %s22, 0
      %p165 = por %p163, %p164
      %s166 = ssub.s32 %s24, %s31
      %p167 = scmp.eq.s32.totalorder %s166, 0
      %s169 = sadd.s32 %s168, 1
      %s170 = scalar_select %p167, %s168, %s169
      %p173 = pneg %p167
      %p174 = scmp.eq.s32.totalorder %s16, 3
      %p175 = por %p173, %p174
      %p176 = scmp.ne.s32.totalorder %s168, %s171
      %p177 = scmp.eq.s32.totalorder %s16, 0
      %p178 = por %p176, %p177
      %p179 = scmp.ne.s32.totalorder %s168, %s171
      %p180 = scmp.eq.s32.totalorder %s21, 3
      %p181 = por %p179, %p180
      %p182 = scmp.ne.s32.totalorder %s171, %s172
      %p183 = scmp.eq.s32.totalorder %s21, 0
      %p184 = por %p182, %p183
      %p185 = scmp.ne.s32.totalorder %s171, %s172
      %p186 = scmp.eq.s32.totalorder %s22, 3
      %p187 = por %p185, %p186
      %p189 = scmp.ne.s32.totalorder %s172, %s188
      %p190 = scmp.eq.s32.totalorder %s22, 0
      %p191 = por %p189, %p190
      %s192 = ssub.s32 %s24, %s31
      %p193 = scmp.eq.s32.totalorder %s192, 0
      %s195 = sadd.s32 %s194, 1
      %s196 = scalar_select %p193, %s194, %s195
      %p199 = pneg %p193
      %p200 = scmp.eq.s32.totalorder %s16, 3
      %p201 = por %p199, %p200
      %p202 = scmp.ne.s32.totalorder %s194, %s197
      %p203 = scmp.eq.s32.totalorder %s16, 0
      %p204 = por %p202, %p203
      %p205 = scmp.ne.s32.totalorder %s194, %s197
      %p206 = scmp.eq.s32.totalorder %s21, 3
      %p207 = por %p205, %p206
      %p208 = scmp.ne.s32.totalorder %s197, %s198
      %p209 = scmp.eq.s32.totalorder %s21, 0
      %p210 = por %p208, %p209
      %p211 = scmp.ne.s32.totalorder %s197, %s198
      %p212 = scmp.eq.s32.totalorder %s22, 3
      %p213 = por %p211, %p212
      %p215 = scmp.ne.s32.totalorder %s198, %s214
      %p216 = scmp.eq.s32.totalorder %s22, 0
      %p217 = por %p215, %p216
      %s218 = ssub.s32 %s23, %s35
      %p219 = scmp.eq.s32.totalorder %s218, 0
      %s221 = sadd.s32 %s220, 1
      %s222 = scalar_select %p219, %s220, %s221
      %p225 = pneg %p219
      %p226 = scmp.eq.s32.totalorder %s16, 3
      %p227 = por %p225, %p226
      %p228 = scmp.ne.s32.totalorder %s220, %s223
      %p229 = scmp.eq.s32.totalorder %s16, 0
      %p230 = por %p228, %p229
      %p231 = scmp.ne.s32.totalorder %s220, %s223
      %p232 = scmp.eq.s32.totalorder %s21, 3
      %p233 = por %p231, %p232
      %p234 = scmp.ne.s32.totalorder %s223, %s224
      %p235 = scmp.eq.s32.totalorder %s21, 0
      %p236 = por %p234, %p235
      %p237 = scmp.ne.s32.totalorder %s223, %s224
      %p238 = scmp.eq.s32.totalorder %s22, 3
      %p239 = por %p237, %p238
      %p241 = scmp.ne.s32.totalorder %s224, %s240
      %p242 = scmp.eq.s32.totalorder %s22, 0
      %p243 = por %p241, %p242
      %p244 = scmp.le.s32.totalorder 1, %s16
      %p245 = scmp.lt.s32.totalorder %s16, 5
      %p246 = pnand %p244, %p245
      %p247 = pneg %p246
      // Predicated region
      $region9: #{tpu_custom_call.1} parent=5 // pred_check
        _
      $region10: #{tpu_custom_call.1} parent=5 // pred_check_branch
        %249 = sbr.rel (%p246) target = $region12
      $region11: #{tpu_custom_call.1} parent=5 // pred_region
        %s250 = ssub.s32 %s16, 1
      $region12: #{tpu_custom_call.1} parent=5 // pred_fallthru
        _
      %p251 = scmp.lt.s32.totalorder %s16, 4
      // Predicated region
      $region13: #{tpu_custom_call.1} parent=5 // pred_check
        %p252 = pneg %p251
      $region14: #{tpu_custom_call.1} parent=5 // pred_check_branch
        %254 = sbr.rel (%p252) target = $region16
      $region15: #{tpu_custom_call.1} parent=5 // pred_region
        // Predicated region
        $region17: #{tpu_custom_call.1} parent=15 // pred_check
          %p255 = pneg %p48
        $region18: #{tpu_custom_call.1} parent=15 // pred_check_branch
          %257 = sbr.rel (%p255) target = $region20
        $region19: #{tpu_custom_call.1} parent=15 // pred_region
          %p258 = scmp.lt.s32.totalorder %s23, 1
          %s259 = scalar_select %p258, %s23, 1
          %s260 = smul.addr %s259, 8
          %s261 = scalar_lea.vmem %s0, %s260
        $region20: #{tpu_custom_call.1} parent=15 // pred_fallthru
          _
        // Predicated region
        $region21: #{tpu_custom_call.1} parent=15 // pred_check
          %p262 = pneg %p74
        $region22: #{tpu_custom_call.1} parent=15 // pred_check_branch
          %264 = sbr.rel (%p262) target = $region24
        $region23: #{tpu_custom_call.1} parent=15 // pred_region
          %p265 = scmp.lt.s32.totalorder %s24, 1
          %s266 = scalar_select %p265, %s24, 1
          %s267 = smul.addr %s266, 4
          %s268 = smul.addr %s267, 4
          %s269 = scalar_lea.vmem %s1, %s268
        $region24: #{tpu_custom_call.1} parent=15 // pred_fallthru
          _
        // Predicated region
        $region25: #{tpu_custom_call.1} parent=15 // pred_check
          %p270 = pneg %p100
        $region26: #{tpu_custom_call.1} parent=15 // pred_check_branch
          %272 = sbr.rel (%p270) target = $region28
        $region27: #{tpu_custom_call.1} parent=15 // pred_region
          %p273 = scmp.lt.s32.totalorder %s24, 1
          %s274 = scalar_select %p273, %s24, 1
          %s275 = smul.addr %s274, 4
          %s276 = smul.addr %s275, 4
          %s277 = scalar_lea.vmem %s2, %s276
        $region28: #{tpu_custom_call.1} parent=15 // pred_fallthru
          _
        // Predicated region
        $region29: #{tpu_custom_call.1} parent=15 // pred_check
          %p278 = pneg %p126
        $region30: #{tpu_custom_call.1} parent=15 // pred_check_branch
          %280 = sbr.rel (%p278) target = $region32
        $region31: #{tpu_custom_call.1} parent=15 // pred_region
          %p281 = scmp.lt.s32.totalorder %s24, 1
          %s282 = scalar_select %p281, %s24, 1
          %s283 = smul.addr %s282, 4
          %s284 = smul.addr %s283, 4
          %s285 = scalar_lea.vmem %s3, %s284
        $region32: #{tpu_custom_call.1} parent=15 // pred_fallthru
          _
        // Predicated region
        $region33: #{tpu_custom_call.1} parent=15 // pred_check
          %p286 = pneg %p152
        $region34: #{tpu_custom_call.1} parent=15 // pred_check_branch
          %288 = sbr.rel (%p286) target = $region36
        $region35: #{tpu_custom_call.1} parent=15 // pred_region
          %p289 = scmp.lt.s32.totalorder %s24, 1
          %s290 = scalar_select %p289, %s24, 1
          %s291 = smul.addr %s290, 8
          %s292 = smul.addr %s291, 4
          %s293 = scalar_lea.vmem %s4, %s292
        $region36: #{tpu_custom_call.1} parent=15 // pred_fallthru
          _
        // Predicated region
        $region37: #{tpu_custom_call.1} parent=15 // pred_check
          %p294 = pneg %p178
        $region38: #{tpu_custom_call.1} parent=15 // pred_check_branch
          %296 = sbr.rel (%p294) target = $region40
        $region39: #{tpu_custom_call.1} parent=15 // pred_region
          %p297 = scmp.lt.s32.totalorder %s24, 1
          %s298 = scalar_select %p297, %s24, 1
          %s299 = smul.addr %s298, 2
          %s300 = smul.addr %s299, 8
          %s301 = scalar_lea.vmem %s5, %s300
        $region40: #{tpu_custom_call.1} parent=15 // pred_fallthru
          _
        // Predicated region
        $region41: #{tpu_custom_call.1} parent=15 // pred_check
          %p302 = pneg %p204
        $region42: #{tpu_custom_call.1} parent=15 // pred_check_branch
          %304 = sbr.rel (%p302) target = $region44
        $region43: #{tpu_custom_call.1} parent=15 // pred_region
          %p305 = scmp.lt.s32.totalorder %s24, 1
          %s306 = scalar_select %p305, %s24, 1
          %s307 = scalar_lea.vmem %s6, %s306
        $region44: #{tpu_custom_call.1} parent=15 // pred_fallthru
          _
      $region16: #{tpu_custom_call.1} parent=5 // pred_fallthru
        _
      %p308 = scmp.le.s32.totalorder 1, %s16
      %p309 = scmp.lt.s32.totalorder %s16, 5
      %p310 = pnand %p308, %p309
      %p311 = pneg %p310
      // Predicated region
      $region45: #{tpu_custom_call.1} parent=5 // pred_check
        _
      $region46: #{tpu_custom_call.1} parent=5 // pred_check_branch
        %313 = sbr.rel (%p310) target = $region48
      $region47: #{tpu_custom_call.1} parent=5 // pred_region
        %s314 = ssub.s32 %s16, 1
        %p315 = scmp.lt.s32.totalorder %s25, 1
        %s316 = scalar_select %p315, %s25, 1
        %s317 = smul.addr %s316, 8
        %s318 = scalar_lea.vmem %s0, %s317
        %p319 = pneg %p54
        %p320 = pneg %p51
        %p321 = scmp.lt.s32.totalorder %s26, 1
        %s322 = scalar_select %p321, %s26, 1
        %s323 = smul.addr %s322, 4
        %s324 = smul.addr %s323, 4
        %s325 = scalar_lea.vmem %s1, %s324
        %p326 = pneg %p80
        %p327 = pneg %p77
        %p328 = scmp.lt.s32.totalorder %s26, 1
        %s329 = scalar_select %p328, %s26, 1
        %s330 = smul.addr %s329, 4
        %s331 = smul.addr %s330, 4
        %s332 = scalar_lea.vmem %s2, %s331
        %p333 = pneg %p106
        %p334 = pneg %p103
        %p335 = scmp.lt.s32.totalorder %s26, 1
        %s336 = scalar_select %p335, %s26, 1
        %s337 = smul.addr %s336, 4
        %s338 = smul.addr %s337, 4
        %s339 = scalar_lea.vmem %s3, %s338
        %p340 = pneg %p132
        %p341 = pneg %p129
        %p342 = scmp.lt.s32.totalorder %s26, 1
        %s343 = scalar_select %p342, %s26, 1
        %s344 = smul.addr %s343, 8
        %s345 = smul.addr %s344, 4
        %s346 = scalar_lea.vmem %s4, %s345
        %p347 = pneg %p158
        %p348 = pneg %p155
        %p349 = scmp.lt.s32.totalorder %s26, 1
        %s350 = scalar_select %p349, %s26, 1
        %s351 = smul.addr %s350, 2
        %s352 = smul.addr %s351, 8
        %s353 = scalar_lea.vmem %s5, %s352
        %p354 = pneg %p184
        %p355 = pneg %p181
        %p356 = scmp.lt.s32.totalorder %s26, 1
        %s357 = scalar_select %p356, %s26, 1
        %s358 = scalar_lea.vmem %s6, %s357
        %p359 = pneg %p210
        %p360 = pneg %p207
        %p361 = pneg %p236
        %p362 = pneg %p233
        %s363 = sand.u32 %s223, 1
        %s364 = scalar_lea.sflag [#allocation4], %s363
        %s365 = sand.u32 %s223, 1
        %s366 = smul.addr %s365, 8
        %s367 = scalar_lea.vmem [#allocation3], %s366
        %p368 = scmp.lt.s32.totalorder %s25, 1
        %s369 = scalar_select %p368, %s25, 1
        %s370 = smul.addr %s369, 8
        %s371 = scalar_lea.vmem %s0, %s370
        %p372 = scmp.lt.s32.totalorder %s26, 1
        %s373 = scalar_select %p372, %s26, 1
        %s374 = smul.addr %s373, 4
        %s375 = smul.addr %s374, 4
        %s376 = scalar_lea.vmem %s1, %s375
        %p377 = scmp.lt.s32.totalorder %s26, 1
        %s378 = scalar_select %p377, %s26, 1
        %s379 = smul.addr %s378, 4
        %s380 = smul.addr %s379, 4
        %s381 = scalar_lea.vmem %s2, %s380
        %p382 = scmp.lt.s32.totalorder %s26, 1
        %s383 = scalar_select %p382, %s26, 1
        %s384 = smul.addr %s383, 4
        %s385 = smul.addr %s384, 4
        %s386 = scalar_lea.vmem %s3, %s385
        %p387 = scmp.lt.s32.totalorder %s26, 1
        %s388 = scalar_select %p387, %s26, 1
        %s389 = smul.addr %s388, 8
        %s390 = smul.addr %s389, 4
        %s391 = scalar_lea.vmem %s4, %s390
        %p392 = scmp.lt.s32.totalorder %s26, 1
        %s393 = scalar_select %p392, %s26, 1
        %s394 = smul.addr %s393, 2
        %s395 = smul.addr %s394, 8
        %s396 = scalar_lea.vmem %s5, %s395
        %p397 = scmp.lt.s32.totalorder %s26, 1
        %s398 = scalar_select %p397, %s26, 1
        %s399 = scalar_lea.vmem %s6, %s398
        %p401 = scmp.eq.s32.totalorder %s26, 0
        // Predicated region
        $region49: #{tpu_custom_call.1} parent=47 // pred_check
          %p402 = pneg %p401
        $region50: #{tpu_custom_call.1} parent=47 // pred_check_branch
          %404 = sbr.rel (%p402) target = $region52
        $region51: #{tpu_custom_call.1} parent=47 // pred_region
          %v405 = vld [vmem:[%s371] sm:$0xff]
          %vm406 = vcmask 261120
          %407 = vst.msk [vmem:[#allocation2] sm:$0xff] %vm406, %v405
        $region52: #{tpu_custom_call.1} parent=47 // pred_fallthru
          _
        %v408 = vld [vmem:[#allocation2] sm:$0xff]
        %v409 = vld [vmem:[%s396] sm:$0xff]
        %v410 = vld [vmem:[%s396 + $0x8] sm:$0x1]
        %v411 = vld [vmem:[%s399] sm:$0x1]
        %v412 = vpack.c.bf16 %v408, %v408
        %v413 = vld [vmem:[%s376] sm:$0xf]
        %v414 = vld [vmem:[%s376 + $0x4] sm:$0xf]
        %v415 = vld [vmem:[%s376 + $0x8] sm:$0xf]
        %v416 = vld [vmem:[%s376 + $0xc] sm:$0xf]
        %v421 = vunpack.c.l.b16 %v413
        %v422 = vunpack.c.l.b16 %v414
        %v423 = vunpack.c.l.b16 %v415
        %v424 = vunpack.c.l.b16 %v416
        %v425 = vpack.c.b16 %v422, %v421
        %v426 = vpack.c.b16 %v424, %v423
        %vm429 = vcmask 261120
        %v431 = vsel %vm429, %v412, 0
        %433 = vmatprep.subr.bf16.mxu0 0
        %434 = vmatpush1.bf16.msra.mxu0 0
        %435 = vmatprep.subr.bf16.mxu0 0
        %436 = vmatpush1.bf16.msra.mxu0 0
        %437 = vmatprep.subr.bf16.mxu0 0
        %438 = vmatpush1.bf16.msra.mxu0 0
        %439 = vmatprep.subr.bf16.mxu0 0
        %440 = vmatpush1.bf16.msra.mxu0 0
        %441 = vmatprep.subr.bf16.mxu0 0
        %442 = vmatpush1.bf16.msra.mxu0 0
        %443 = vmatprep.subr.bf16.mxu0 0
        %444 = vmatpush1.bf16.msra.mxu0 0
        %445 = vmatprep.subr.bf16.mxu0 0
        %446 = vmatpush1.bf16.msra.mxu0 %v426
        %447 = vmatprep.subr.bf16.mxu0 0
        %448 = vmatpush1.bf16.msra.mxu0 %v425
        %449 = vmatprep.subr.bf16.mxu0 0
        %450 = vmatpush2.bf16.msra.mxu0 0
        %451 = vmatprep.subr.bf16.mxu0 0
        %452 = vmatpush2.bf16.msra.mxu0 0
        %453 = vmatprep.subr.bf16.mxu0 0
        %454 = vmatpush2.bf16.msra.mxu0 0
        %455 = vmatprep.subr.bf16.mxu0 0
        %456 = vmatpush2.bf16.msra.mxu0 0
        %457 = vmatprep.subr.bf16.mxu0 0
        %458 = vmatpush2.bf16.msra.mxu0 0
        %459 = vmatprep.subr.bf16.mxu0 0
        %460 = vmatpush2.bf16.msra.mxu0 0
        %461 = vmatprep.subr.bf16.mxu0 0
        %462 = vmatpush2.bf16.msra.mxu0 0
        %463 = vmatprep.subr.bf16.mxu0 0
        %464 = vmatpush2.bf16.msra.mxu0 0
        %465 = vmatprep.mubr.bf16.mxu0 0
        %466 = vmatmul.mubr.bf16.gmra.mxu0 %v431
        %v467 = vpop.f32.mrf.mxu0
        %v468 = vadd.f32 0.0, %v467
        %v469 = vpop.f32.mrf.mxu0
        %v470 = vpop.f32.mrf.mxu0
        %v471 = vpop.f32.mrf.mxu0
        %472 = vdwg.mxu0
        %v473 = vlaneseq
        %v474 = vshrl.u32 %v473, 7
        %v475 = vsub.s32 0, %v474
        %v476 = vrot.slane %v409, %v475
        %v477 = vadd.f32 %v468, %v476
        %v478 = vlaneseq
        %v479 = vshrl.u32 %v478, 7
        %v480 = vsub.s32 1, %v479
        %v481 = vrot.slane %v409, %v480
        %483 = vrot.lane.b32.xlu0 %v481, 32
        %v484 = vpop.permute.xlu0 %483
        %v486 = vadd.f32 %v468, %v484
        %v487 = vlaneseq
        %v488 = vshrl.u32 %v487, 7
        %v489 = vsub.s32 2, %v488
        %v490 = vrot.slane %v409, %v489
        %492 = vrot.lane.b32.xlu0 %v490, 64
        %v493 = vpop.permute.xlu0 %492
        %v495 = vadd.f32 %v468, %v493
        %497 = vrot.lane.b32.xlu0 %v477, 120
        %v498 = vpop.permute.xlu0 %497
        %500 = vrot.lane.b32.xlu0 %v477, 112
        %v501 = vpop.permute.xlu0 %500
        %503 = vrot.lane.b32.xlu0 %v477, 104
        %v504 = vpop.permute.xlu0 %503
        %v506 = vcombine.low %v477, %v501
        %v507 = vcombine.high %v477, %v501
        %v509 = vunpack.c.l.s4 1983009808
        %v510 = vunpack.c.0.s8 %v509
        %v511 = vlaneseq
        %v512 = vshrl.u32 %v511, 7
        %v513 = vsub.s32 %v510, %v512
        %v514 = vrot.slane %v506, %v513
        %v516 = vunpack.c.l.s4 1983009808
        %v517 = vunpack.c.0.s8 %v516
        %v518 = vlaneseq
        %v519 = vshrl.u32 %v518, 7
        %v520 = vsub.s32 %v517, %v519
        %v521 = vrot.slane %v507, %v520
        %v522 = vcombine.low %v498, %v504
        %v523 = vcombine.high %v498, %v504
        %v525 = vunpack.c.l.s4 1983009808
        %v526 = vunpack.c.0.s8 %v525
        %v527 = vlaneseq
        %v528 = vshrl.u32 %v527, 7
        %v529 = vsub.s32 %v526, %v528
        %v530 = vrot.slane %v522, %v529
        %v532 = vunpack.c.l.s4 1983009808
        %v533 = vunpack.c.0.s8 %v532
        %v534 = vlaneseq
        %v535 = vshrl.u32 %v534, 7
        %v536 = vsub.s32 %v533, %v535
        %v537 = vrot.slane %v523, %v536
        %v538 = vcombine.low %v514, %v530
        %v539 = vcombine.high %v514, %v530
        %v541 = vunpack.c.l.s4 1934713408
        %v542 = vunpack.c.0.s8 %v541
        %v543 = vlaneseq
        %v544 = vshrl.u32 %v543, 7
        %v545 = vsub.s32 %v542, %v544
        %v546 = vrot.slane %v538, %v545
        %v548 = vunpack.c.l.s4 1934713408
        %v549 = vunpack.c.0.s8 %v548
        %v550 = vlaneseq
        %v551 = vshrl.u32 %v550, 7
        %v552 = vsub.s32 %v549, %v551
        %v553 = vrot.slane %v539, %v552
        %v554 = vcombine.low %v521, %v537
        %v555 = vcombine.high %v521, %v537
        %v557 = vunpack.c.l.s4 1934713408
        %v558 = vunpack.c.0.s8 %v557
        %v559 = vlaneseq
        %v560 = vshrl.u32 %v559, 7
        %v561 = vsub.s32 %v558, %v560
        %v562 = vrot.slane %v554, %v561
        %v564 = vunpack.c.l.s4 1934713408
        %v565 = vunpack.c.0.s8 %v564
        %v566 = vlaneseq
        %v567 = vshrl.u32 %v566, 7
        %v568 = vsub.s32 %v565, %v567
        %v569 = vrot.slane %v555, %v568
        %v570 = vcombine.high %v546, 0.0
        %v571 = vcombine.high %v553, 0.0
        %v572 = vcombine.high %v562, 0.0
        %v573 = vcombine.high %v569, 0.0
        %v574 = vcombine.low %v546, %v553
        %v576 = vunpack.c.l.s4 1983009808
        %v577 = vunpack.c.0.s8 %v576
        %v578 = vlaneseq
        %v579 = vshrl.u32 %v578, 7
        %v580 = vsub.s32 %v577, %v579
        %v581 = vrot.slane %v574, %v580
        %v582 = vcombine.low %v570, %v571
        %v584 = vunpack.c.l.s4 1983009808
        %v585 = vunpack.c.0.s8 %v584
        %v586 = vlaneseq
        %v587 = vshrl.u32 %v586, 7
        %v588 = vsub.s32 %v585, %v587
        %v589 = vrot.slane %v582, %v588
        %v590 = vcombine.low %v562, %v569
        %v592 = vunpack.c.l.s4 1983009808
        %v593 = vunpack.c.0.s8 %v592
        %v594 = vlaneseq
        %v595 = vshrl.u32 %v594, 7
        %v596 = vsub.s32 %v593, %v595
        %v597 = vrot.slane %v590, %v596
        %v598 = vcombine.low %v572, %v573
        %v600 = vunpack.c.l.s4 1983009808
        %v601 = vunpack.c.0.s8 %v600
        %v602 = vlaneseq
        %v603 = vshrl.u32 %v602, 7
        %v604 = vsub.s32 %v601, %v603
        %v605 = vrot.slane %v598, %v604
        %v606 = vcombine.low %v581, %v589
        %v607 = vcombine.high %v581, %v589
        %v609 = vunpack.c.l.s4 1934713408
        %v610 = vunpack.c.0.s8 %v609
        %v611 = vlaneseq
        %v612 = vshrl.u32 %v611, 7
        %v613 = vsub.s32 %v610, %v612
        %v614 = vrot.slane %v606, %v613
        %v616 = vunpack.c.l.s4 1934713408
        %v617 = vunpack.c.0.s8 %v616
        %v618 = vlaneseq
        %v619 = vshrl.u32 %v618, 7
        %v620 = vsub.s32 %v617, %v619
        %v621 = vrot.slane %v607, %v620
        %v622 = vcombine.low %v597, %v605
        %v623 = vcombine.high %v597, %v605
        %v625 = vunpack.c.l.s4 1934713408
        %v626 = vunpack.c.0.s8 %v625
        %v627 = vlaneseq
        %v628 = vshrl.u32 %v627, 7
        %v629 = vsub.s32 %v626, %v628
        %v630 = vrot.slane %v622, %v629
        %v632 = vunpack.c.l.s4 1934713408
        %v633 = vunpack.c.0.s8 %v632
        %v634 = vlaneseq
        %v635 = vshrl.u32 %v634, 7
        %v636 = vsub.s32 %v633, %v635
        %v637 = vrot.slane %v623, %v636
        %v638 = vcombine.low %v614, %v630
        %v639 = vcombine.high %v614, %v630
        %v640 = vcombine.low %v621, %v637
        %v641 = vcombine.high %v621, %v637
        %v642 = vpack.c.bf16 %v638, %v638
        %v643 = vpack.c.bf16 %v639, %v639
        %v644 = vpack.c.bf16 %v640, %v640
        %v645 = vpack.c.bf16 %v641, %v641
        %647 = vrot.lane.b32.xlu0 %v486, 120
        %v648 = vpop.permute.xlu0 %647
        %649 = vrot.lane.b32.xlu0 %v486, 112
        %v650 = vpop.permute.xlu0 %649
        %651 = vrot.lane.b32.xlu0 %v486, 104
        %v652 = vpop.permute.xlu0 %651
        %653 = vrot.lane.b32.xlu0 %v486, 96
        %v654 = vpop.permute.xlu0 %653
        %655 = vrot.lane.b32.xlu0 %v648, 96
        %v656 = vpop.permute.xlu0 %655
        %657 = vrot.lane.b32.xlu0 %v650, 96
        %v658 = vpop.permute.xlu0 %657
        %659 = vrot.lane.b32.xlu0 %v652, 96
        %v660 = vpop.permute.xlu0 %659
        %v665 = vcombine.low %v654, %v658
        %v666 = vcombine.high %v654, %v658
        %v668 = vunpack.c.l.s4 1983009808
        %v669 = vunpack.c.0.s8 %v668
        %v670 = vlaneseq
        %v671 = vshrl.u32 %v670, 7
        %v672 = vsub.s32 %v669, %v671
        %v673 = vrot.slane %v665, %v672
        %v675 = vunpack.c.l.s4 1983009808
        %v676 = vunpack.c.0.s8 %v675
        %v677 = vlaneseq
        %v678 = vshrl.u32 %v677, 7
        %v679 = vsub.s32 %v676, %v678
        %v680 = vrot.slane %v666, %v679
        %v681 = vcombine.low %v656, %v660
        %v682 = vcombine.high %v656, %v660
        %v684 = vunpack.c.l.s4 1983009808
        %v685 = vunpack.c.0.s8 %v684
        %v686 = vlaneseq
        %v687 = vshrl.u32 %v686, 7
        %v688 = vsub.s32 %v685, %v687
        %v689 = vrot.slane %v681, %v688
        %v691 = vunpack.c.l.s4 1983009808
        %v692 = vunpack.c.0.s8 %v691
        %v693 = vlaneseq
        %v694 = vshrl.u32 %v693, 7
        %v695 = vsub.s32 %v692, %v694
        %v696 = vrot.slane %v682, %v695
        %v697 = vcombine.low %v673, %v689
        %v698 = vcombine.high %v673, %v689
        %v700 = vunpack.c.l.s4 1934713408
        %v701 = vunpack.c.0.s8 %v700
        %v702 = vlaneseq
        %v703 = vshrl.u32 %v702, 7
        %v704 = vsub.s32 %v701, %v703
        %v705 = vrot.slane %v697, %v704
        %v707 = vunpack.c.l.s4 1934713408
        %v708 = vunpack.c.0.s8 %v707
        %v709 = vlaneseq
        %v710 = vshrl.u32 %v709, 7
        %v711 = vsub.s32 %v708, %v710
        %v712 = vrot.slane %v698, %v711
        %v713 = vcombine.low %v680, %v696
        %v714 = vcombine.high %v680, %v696
        %v716 = vunpack.c.l.s4 1934713408
        %v717 = vunpack.c.0.s8 %v716
        %v718 = vlaneseq
        %v719 = vshrl.u32 %v718, 7
        %v720 = vsub.s32 %v717, %v719
        %v721 = vrot.slane %v713, %v720
        %v723 = vunpack.c.l.s4 1934713408
        %v724 = vunpack.c.0.s8 %v723
        %v725 = vlaneseq
        %v726 = vshrl.u32 %v725, 7
        %v727 = vsub.s32 %v724, %v726
        %v728 = vrot.slane %v714, %v727
        %v729 = vcombine.high %v705, 0.0
        %v730 = vcombine.high %v712, 0.0
        %v731 = vcombine.high %v721, 0.0
        %v732 = vcombine.high %v728, 0.0
        %v733 = vcombine.low %v705, %v712
        %v735 = vunpack.c.l.s4 1983009808
        %v736 = vunpack.c.0.s8 %v735
        %v737 = vlaneseq
        %v738 = vshrl.u32 %v737, 7
        %v739 = vsub.s32 %v736, %v738
        %v740 = vrot.slane %v733, %v739
        %v741 = vcombine.low %v729, %v730
        %v743 = vunpack.c.l.s4 1983009808
        %v744 = vunpack.c.0.s8 %v743
        %v745 = vlaneseq
        %v746 = vshrl.u32 %v745, 7
        %v747 = vsub.s32 %v744, %v746
        %v748 = vrot.slane %v741, %v747
        %v749 = vcombine.low %v721, %v728
        %v751 = vunpack.c.l.s4 1983009808
        %v752 = vunpack.c.0.s8 %v751
        %v753 = vlaneseq
        %v754 = vshrl.u32 %v753, 7
        %v755 = vsub.s32 %v752, %v754
        %v756 = vrot.slane %v749, %v755
        %v757 = vcombine.low %v731, %v732
        %v759 = vunpack.c.l.s4 1983009808
        %v760 = vunpack.c.0.s8 %v759
        %v761 = vlaneseq
        %v762 = vshrl.u32 %v761, 7
        %v763 = vsub.s32 %v760, %v762
        %v764 = vrot.slane %v757, %v763
        %v765 = vcombine.low %v740, %v748
        %v766 = vcombine.high %v740, %v748
        %v768 = vunpack.c.l.s4 1934713408
        %v769 = vunpack.c.0.s8 %v768
        %v770 = vlaneseq
        %v771 = vshrl.u32 %v770, 7
        %v772 = vsub.s32 %v769, %v771
        %v773 = vrot.slane %v765, %v772
        %v775 = vunpack.c.l.s4 1934713408
        %v776 = vunpack.c.0.s8 %v775
        %v777 = vlaneseq
        %v778 = vshrl.u32 %v777, 7
        %v779 = vsub.s32 %v776, %v778
        %v780 = vrot.slane %v766, %v779
        %v781 = vcombine.low %v756, %v764
        %v782 = vcombine.high %v756, %v764
        %v784 = vunpack.c.l.s4 1934713408
        %v785 = vunpack.c.0.s8 %v784
        %v786 = vlaneseq
        %v787 = vshrl.u32 %v786, 7
        %v788 = vsub.s32 %v785, %v787
        %v789 = vrot.slane %v781, %v788
        %v791 = vunpack.c.l.s4 1934713408
        %v792 = vunpack.c.0.s8 %v791
        %v793 = vlaneseq
        %v794 = vshrl.u32 %v793, 7
        %v795 = vsub.s32 %v792, %v794
        %v796 = vrot.slane %v782, %v795
        %v797 = vcombine.low %v773, %v789
        %v798 = vcombine.high %v773, %v789
        %v799 = vcombine.low %v780, %v796
        %v800 = vcombine.high %v780, %v796
        %v801 = vpack.c.bf16 %v797, %v797
        %v802 = vpack.c.bf16 %v798, %v798
        %v803 = vpack.c.bf16 %v799, %v799
        %v804 = vpack.c.bf16 %v800, %v800
        %806 = vrot.lane.b32.xlu0 %v495, 120
        %v807 = vpop.permute.xlu0 %806
        %808 = vrot.lane.b32.xlu0 %v495, 112
        %v809 = vpop.permute.xlu0 %808
        %810 = vrot.lane.b32.xlu0 %v495, 104
        %v811 = vpop.permute.xlu0 %810
        %812 = vrot.lane.b32.xlu0 %v495, 64
        %v813 = vpop.permute.xlu0 %812
        %814 = vrot.lane.b32.xlu0 %v807, 64
        %v815 = vpop.permute.xlu0 %814
        %816 = vrot.lane.b32.xlu0 %v809, 64
        %v817 = vpop.permute.xlu0 %816
        %818 = vrot.lane.b32.xlu0 %v811, 64
        %v819 = vpop.permute.xlu0 %818
        %v824 = vcombine.low %v813, %v817
        %v825 = vcombine.high %v813, %v817
        %v827 = vunpack.c.l.s4 1983009808
        %v828 = vunpack.c.0.s8 %v827
        %v829 = vlaneseq
        %v830 = vshrl.u32 %v829, 7
        %v831 = vsub.s32 %v828, %v830
        %v832 = vrot.slane %v824, %v831
        %v834 = vunpack.c.l.s4 1983009808
        %v835 = vunpack.c.0.s8 %v834
        %v836 = vlaneseq
        %v837 = vshrl.u32 %v836, 7
        %v838 = vsub.s32 %v835, %v837
        %v839 = vrot.slane %v825, %v838
        %v840 = vcombine.low %v815, %v819
        %v841 = vcombine.high %v815, %v819
        %v843 = vunpack.c.l.s4 1983009808
        %v844 = vunpack.c.0.s8 %v843
        %v845 = vlaneseq
        %v846 = vshrl.u32 %v845, 7
        %v847 = vsub.s32 %v844, %v846
        %v848 = vrot.slane %v840, %v847
        %v850 = vunpack.c.l.s4 1983009808
        %v851 = vunpack.c.0.s8 %v850
        %v852 = vlaneseq
        %v853 = vshrl.u32 %v852, 7
        %v854 = vsub.s32 %v851, %v853
        %v855 = vrot.slane %v841, %v854
        %v856 = vcombine.low %v832, %v848
        %v857 = vcombine.high %v832, %v848
        %v859 = vunpack.c.l.s4 1934713408
        %v860 = vunpack.c.0.s8 %v859
        %v861 = vlaneseq
        %v862 = vshrl.u32 %v861, 7
        %v863 = vsub.s32 %v860, %v862
        %v864 = vrot.slane %v856, %v863
        %v866 = vunpack.c.l.s4 1934713408
        %v867 = vunpack.c.0.s8 %v866
        %v868 = vlaneseq
        %v869 = vshrl.u32 %v868, 7
        %v870 = vsub.s32 %v867, %v869
        %v871 = vrot.slane %v857, %v870
        %v872 = vcombine.low %v839, %v855
        %v873 = vcombine.high %v839, %v855
        %v875 = vunpack.c.l.s4 1934713408
        %v876 = vunpack.c.0.s8 %v875
        %v877 = vlaneseq
        %v878 = vshrl.u32 %v877, 7
        %v879 = vsub.s32 %v876, %v878
        %v880 = vrot.slane %v872, %v879
        %v882 = vunpack.c.l.s4 1934713408
        %v883 = vunpack.c.0.s8 %v882
        %v884 = vlaneseq
        %v885 = vshrl.u32 %v884, 7
        %v886 = vsub.s32 %v883, %v885
        %v887 = vrot.slane %v873, %v886
        %v888 = vcombine.high %v864, 0.0
        %v889 = vcombine.high %v871, 0.0
        %v890 = vcombine.high %v880, 0.0
        %v891 = vcombine.high %v887, 0.0
        %v892 = vcombine.low %v864, %v871
        %v894 = vunpack.c.l.s4 1983009808
        %v895 = vunpack.c.0.s8 %v894
        %v896 = vlaneseq
        %v897 = vshrl.u32 %v896, 7
        %v898 = vsub.s32 %v895, %v897
        %v899 = vrot.slane %v892, %v898
        %v900 = vcombine.low %v888, %v889
        %v902 = vunpack.c.l.s4 1983009808
        %v903 = vunpack.c.0.s8 %v902
        %v904 = vlaneseq
        %v905 = vshrl.u32 %v904, 7
        %v906 = vsub.s32 %v903, %v905
        %v907 = vrot.slane %v900, %v906
        %v908 = vcombine.low %v880, %v887
        %v910 = vunpack.c.l.s4 1983009808
        %v911 = vunpack.c.0.s8 %v910
        %v912 = vlaneseq
        %v913 = vshrl.u32 %v912, 7
        %v914 = vsub.s32 %v911, %v913
        %v915 = vrot.slane %v908, %v914
        %v916 = vcombine.low %v890, %v891
        %v918 = vunpack.c.l.s4 1983009808
        %v919 = vunpack.c.0.s8 %v918
        %v920 = vlaneseq
        %v921 = vshrl.u32 %v920, 7
        %v922 = vsub.s32 %v919, %v921
        %v923 = vrot.slane %v916, %v922
        %v924 = vcombine.low %v899, %v907
        %v925 = vcombine.high %v899, %v907
        %v927 = vunpack.c.l.s4 1934713408
        %v928 = vunpack.c.0.s8 %v927
        %v929 = vlaneseq
        %v930 = vshrl.u32 %v929, 7
        %v931 = vsub.s32 %v928, %v930
        %v932 = vrot.slane %v924, %v931
        %v934 = vunpack.c.l.s4 1934713408
        %v935 = vunpack.c.0.s8 %v934
        %v936 = vlaneseq
        %v937 = vshrl.u32 %v936, 7
        %v938 = vsub.s32 %v935, %v937
        %v939 = vrot.slane %v925, %v938
        %v940 = vcombine.low %v915, %v923
        %v941 = vcombine.high %v915, %v923
        %v943 = vunpack.c.l.s4 1934713408
        %v944 = vunpack.c.0.s8 %v943
        %v945 = vlaneseq
        %v946 = vshrl.u32 %v945, 7
        %v947 = vsub.s32 %v944, %v946
        %v948 = vrot.slane %v940, %v947
        %v950 = vunpack.c.l.s4 1934713408
        %v951 = vunpack.c.0.s8 %v950
        %v952 = vlaneseq
        %v953 = vshrl.u32 %v952, 7
        %v954 = vsub.s32 %v951, %v953
        %v955 = vrot.slane %v941, %v954
        %v956 = vcombine.low %v932, %v948
        %v957 = vcombine.high %v932, %v948
        %v958 = vcombine.low %v939, %v955
        %v959 = vcombine.high %v939, %v955
        %v960 = vpack.c.bf16 %v956, %v956
        %v961 = vpack.c.bf16 %v957, %v957
        %v962 = vpack.c.bf16 %v958, %v958
        %v963 = vpack.c.bf16 %v959, %v959
        %vm964 = vcmask 64512
        %v966 = vsel %vm964, %v642, 0
        %v969 = vsel %vm964, %v801, 0
        %971 = vmatprep.subr.bf16.mxu0 0
        %972 = vmatpush1.bf16.xpose.msra.mxu0 0
        %973 = vmatprep.subr.bf16.mxu0 0
        %974 = vmatpush1.bf16.xpose.msra.mxu0 0
        %975 = vmatprep.subr.bf16.mxu0 0
        %976 = vmatpush1.bf16.xpose.msra.mxu0 0
        %977 = vmatprep.subr.bf16.mxu0 0
        %978 = vmatpush1.bf16.xpose.msra.mxu0 0
        %979 = vmatprep.subr.bf16.mxu0 0
        %980 = vmatpush1.bf16.xpose.msra.mxu0 0
        %981 = vmatprep.subr.bf16.mxu0 0
        %982 = vmatpush1.bf16.xpose.msra.mxu0 0
        %983 = vmatprep.subr.bf16.mxu0 0
        %984 = vmatpush1.bf16.xpose.msra.mxu0 0
        %985 = vmatprep.subr.bf16.mxu0 0
        %986 = vmatpush1.bf16.xpose.msra.mxu0 %v969
        %987 = vmatprep.subr.bf16.mxu0 0
        %988 = vmatpush2.bf16.xpose.msra.mxu0 0
        %989 = vmatprep.subr.bf16.mxu0 0
        %990 = vmatpush2.bf16.xpose.msra.mxu0 0
        %991 = vmatprep.subr.bf16.mxu0 0
        %992 = vmatpush2.bf16.xpose.msra.mxu0 0
        %993 = vmatprep.subr.bf16.mxu0 0
        %994 = vmatpush2.bf16.xpose.msra.mxu0 0
        %995 = vmatprep.subr.bf16.mxu0 0
        %996 = vmatpush2.bf16.xpose.msra.mxu0 0
        %997 = vmatprep.subr.bf16.mxu0 0
        %998 = vmatpush2.bf16.xpose.msra.mxu0 0
        %999 = vmatprep.subr.bf16.mxu0 0
        %1000 = vmatpush2.bf16.xpose.msra.mxu0 0
        %1001 = vmatprep.subr.bf16.mxu0 0
        %1002 = vmatpush2.bf16.xpose.msra.mxu0 0
        %1003 = vmatprep.mubr.bf16.mxu0 0
        %1004 = vmatmul.mubr.bf16.gmra.mxu0 %v966
        %v1005 = vpop.f32.mrf.mxu0
        %v1006 = vadd.f32 0.0, %v1005
        %v1007 = vpop.f32.mrf.mxu0
        %v1008 = vpop.f32.mrf.mxu0
        %v1009 = vpop.f32.mrf.mxu0
        %1010 = vdwg.mxu0
        %v1012 = vsel %vm964, %v643, 0
        %v1015 = vsel %vm964, %v802, 0
        %1017 = vmatprep.subr.bf16.mxu0 0
        %1018 = vmatpush1.bf16.xpose.msra.mxu0 0
        %1019 = vmatprep.subr.bf16.mxu0 0
        %1020 = vmatpush1.bf16.xpose.msra.mxu0 0
        %1021 = vmatprep.subr.bf16.mxu0 0
        %1022 = vmatpush1.bf16.xpose.msra.mxu0 0
        %1023 = vmatprep.subr.bf16.mxu0 0
        %1024 = vmatpush1.bf16.xpose.msra.mxu0 0
        %1025 = vmatprep.subr.bf16.mxu0 0
        %1026 = vmatpush1.bf16.xpose.msra.mxu0 0
        %1027 = vmatprep.subr.bf16.mxu0 0
        %1028 = vmatpush1.bf16.xpose.msra.mxu0 0
        %1029 = vmatprep.subr.bf16.mxu0 0
        %1030 = vmatpush1.bf16.xpose.msra.mxu0 0
        %1031 = vmatprep.subr.bf16.mxu0 0
        %1032 = vmatpush1.bf16.xpose.msra.mxu0 %v1015
        %1033 = vmatprep.subr.bf16.mxu0 0
        %1034 = vmatpush2.bf16.xpose.msra.mxu0 0
        %1035 = vmatprep.subr.bf16.mxu0 0
        %1036 = vmatpush2.bf16.xpose.msra.mxu0 0
        %1037 = vmatprep.subr.bf16.mxu0 0
        %1038 = vmatpush2.bf16.xpose.msra.mxu0 0
        %1039 = vmatprep.subr.bf16.mxu0 0
        %1040 = vmatpush2.bf16.xpose.msra.mxu0 0
        %1041 = vmatprep.subr.bf16.mxu0 0
        %1042 = vmatpush2.bf16.xpose.msra.mxu0 0
        %1043 = vmatprep.subr.bf16.mxu0 0
        %1044 = vmatpush2.bf16.xpose.msra.mxu0 0
        %1045 = vmatprep.subr.bf16.mxu0 0
        %1046 = vmatpush2.bf16.xpose.msra.mxu0 0
        %1047 = vmatprep.subr.bf16.mxu0 0
        %1048 = vmatpush2.bf16.xpose.msra.mxu0 0
        %1049 = vmatprep.mubr.bf16.mxu0 0
        %1050 = vmatmul.mubr.bf16.gmra.mxu0 %v1012
        %v1051 = vpop.f32.mrf.mxu0
        %v1052 = vadd.f32 0.0, %v1051
        %v1053 = vpop.f32.mrf.mxu0
        %v1054 = vpop.f32.mrf.mxu0
        %v1055 = vpop.f32.mrf.mxu0
        %1056 = vdwg.mxu0
        %v1058 = vsel %vm964, %v644, 0
        %v1061 = vsel %vm964, %v803, 0
        %1063 = vmatprep.subr.bf16.mxu0 0
        %1064 = vmatpush1.bf16.xpose.msra.mxu0 0
        %1065 = vmatprep.subr.bf16.mxu0 0
        %1066 = vmatpush1.bf16.xpose.msra.mxu0 0
        %1067 = vmatprep.subr.bf16.mxu0 0
        %1068 = vmatpush1.bf16.xpose.msra.mxu0 0
        %1069 = vmatprep.subr.bf16.mxu0 0
        %1070 = vmatpush1.bf16.xpose.msra.mxu0 0
        %1071 = vmatprep.subr.bf16.mxu0 0
        %1072 = vmatpush1.bf16.xpose.msra.mxu0 0
        %1073 = vmatprep.subr.bf16.mxu0 0
        %1074 = vmatpush1.bf16.xpose.msra.mxu0 0
        %1075 = vmatprep.subr.bf16.mxu0 0
        %1076 = vmatpush1.bf16.xpose.msra.mxu0 0
        %1077 = vmatprep.subr.bf16.mxu0 0
        %1078 = vmatpush1.bf16.xpose.msra.mxu0 %v1061
        %1079 = vmatprep.subr.bf16.mxu0 0
        %1080 = vmatpush2.bf16.xpose.msra.mxu0 0
        %1081 = vmatprep.subr.bf16.mxu0 0
        %1082 = vmatpush2.bf16.xpose.msra.mxu0 0
        %1083 = vmatprep.subr.bf16.mxu0 0
        %1084 = vmatpush2.bf16.xpose.msra.mxu0 0
        %1085 = vmatprep.subr.bf16.mxu0 0
        %1086 = vmatpush2.bf16.xpose.msra.mxu0 0
        %1087 = vmatprep.subr.bf16.mxu0 0
        %1088 = vmatpush2.bf16.xpose.msra.mxu0 0
        %1089 = vmatprep.subr.bf16.mxu0 0
        %1090 = vmatpush2.bf16.xpose.msra.mxu0 0
        %1091 = vmatprep.subr.bf16.mxu0 0
        %1092 = vmatpush2.bf16.xpose.msra.mxu0 0
        %1093 = vmatprep.subr.bf16.mxu0 0
        %1094 = vmatpush2.bf16.xpose.msra.mxu0 0
        %1095 = vmatprep.mubr.bf16.mxu0 0
        %1096 = vmatmul.mubr.bf16.gmra.mxu0 %v1058
        %v1097 = vpop.f32.mrf.mxu0
        %v1098 = vadd.f32 0.0, %v1097
        %v1099 = vpop.f32.mrf.mxu0
        %v1100 = vpop.f32.mrf.mxu0
        %v1101 = vpop.f32.mrf.mxu0
        %1102 = vdwg.mxu0
        %v1104 = vsel %vm964, %v645, 0
        %v1107 = vsel %vm964, %v804, 0
        %1109 = vmatprep.subr.bf16.mxu0 0
        %1110 = vmatpush1.bf16.xpose.msra.mxu0 0
        %1111 = vmatprep.subr.bf16.mxu0 0
        %1112 = vmatpush1.bf16.xpose.msra.mxu0 0
        %1113 = vmatprep.subr.bf16.mxu0 0
        %1114 = vmatpush1.bf16.xpose.msra.mxu0 0
        %1115 = vmatprep.subr.bf16.mxu0 0
        %1116 = vmatpush1.bf16.xpose.msra.mxu0 0
        %1117 = vmatprep.subr.bf16.mxu0 0
        %1118 = vmatpush1.bf16.xpose.msra.mxu0 0
        %1119 = vmatprep.subr.bf16.mxu0 0
        %1120 = vmatpush1.bf16.xpose.msra.mxu0 0
        %1121 = vmatprep.subr.bf16.mxu0 0
        %1122 = vmatpush1.bf16.xpose.msra.mxu0 0
        %1123 = vmatprep.subr.bf16.mxu0 0
        %1124 = vmatpush1.bf16.xpose.msra.mxu0 %v1107
        %1125 = vmatprep.subr.bf16.mxu0 0
        %1126 = vmatpush2.bf16.xpose.msra.mxu0 0
        %1127 = vmatprep.subr.bf16.mxu0 0
        %1128 = vmatpush2.bf16.xpose.msra.mxu0 0
        %1129 = vmatprep.subr.bf16.mxu0 0
        %1130 = vmatpush2.bf16.xpose.msra.mxu0 0
        %1131 = vmatprep.subr.bf16.mxu0 0
        %1132 = vmatpush2.bf16.xpose.msra.mxu0 0
        %1133 = vmatprep.subr.bf16.mxu0 0
        %1134 = vmatpush2.bf16.xpose.msra.mxu0 0
        %1135 = vmatprep.subr.bf16.mxu0 0
        %1136 = vmatpush2.bf16.xpose.msra.mxu0 0
        %1137 = vmatprep.subr.bf16.mxu0 0
        %1138 = vmatpush2.bf16.xpose.msra.mxu0 0
        %1139 = vmatprep.subr.bf16.mxu0 0
        %1140 = vmatpush2.bf16.xpose.msra.mxu0 0
        %1141 = vmatprep.mubr.bf16.mxu0 0
        %1142 = vmatmul.mubr.bf16.gmra.mxu0 %v1104
        %v1143 = vpop.f32.mrf.mxu0
        %v1144 = vadd.f32 0.0, %v1143
        %v1145 = vpop.f32.mrf.mxu0
        %v1146 = vpop.f32.mrf.mxu0
        %v1147 = vpop.f32.mrf.mxu0
        %1148 = vdwg.mxu0
        %v1149 = vsel %vm964, %v1006, -inf
        %1150 = vmax.xlane.f32.xlu0 %v1149
        %v1151 = vpop.xlane.xlu0 %1150
        %v1152 = vsel %vm964, %v1052, -inf
        %1153 = vmax.xlane.f32.xlu0 %v1152
        %v1154 = vpop.xlane.xlu0 %1153
        %v1155 = vsel %vm964, %v1098, -inf
        %1156 = vmax.xlane.f32.xlu0 %v1155
        %v1157 = vpop.xlane.xlu0 %1156
        %v1158 = vsel %vm964, %v1144, -inf
        %1159 = vmax.xlane.f32.xlu0 %v1158
        %v1160 = vpop.xlane.xlu0 %1159
        %v1161 = vsub.f32 %v1006, %v1151
        %v1162 = vsub.f32 %v1052, %v1154
        %v1163 = vsub.f32 %v1098, %v1157
        %v1164 = vsub.f32 %v1144, %v1160
        %v1165 = vmul.f32 %v1161, 1.442695
        %v1166 = vpow.pop %v1165
        %v1167 = vmul.f32 %v1162, 1.442695
        %v1168 = vpow.pop %v1167
        %v1169 = vmul.f32 %v1163, 1.442695
        %v1170 = vpow.pop %v1169
        %v1171 = vmul.f32 %v1164, 1.442695
        %v1172 = vpow.pop %v1171
        %v1173 = vsel %vm964, %v1166, 0.0
        %1174 = vadd.xlane.f32.xlu0 %v1173
        %v1175 = vpop.xlane.xlu0 %1174
        %v1176 = vsel %vm964, %v1168, 0.0
        %1177 = vadd.xlane.f32.xlu0 %v1176
        %v1178 = vpop.xlane.xlu0 %1177
        %v1179 = vsel %vm964, %v1170, 0.0
        %1180 = vadd.xlane.f32.xlu0 %v1179
        %v1181 = vpop.xlane.xlu0 %1180
        %v1182 = vsel %vm964, %v1172, 0.0
        %1183 = vadd.xlane.f32.xlu0 %v1182
        %v1184 = vpop.xlane.xlu0 %1183
        %v1185 = vrcp.pop %v1175
        %v1186 = vrcp.pop %v1178
        %v1187 = vrcp.pop %v1181
        %v1188 = vrcp.pop %v1184
        %v1189 = vmul.f32 %v1166, %v1185
        %v1190 = vmul.f32 %v1168, %v1186
        %v1191 = vmul.f32 %v1170, %v1187
        %v1192 = vmul.f32 %v1172, %v1188
        %v1193 = vpack.c.bf16 %v1189, %v1189
        %v1194 = vpack.c.bf16 %v1190, %v1190
        %v1195 = vpack.c.bf16 %v1191, %v1191
        %v1196 = vpack.c.bf16 %v1192, %v1192
        %v1198 = vsel %vm964, %v1193, 0
        %vm1200 = vcmask 1043456
        %v1202 = vsel %vm1200, %v960, 0
        %1204 = vmatprep.subr.bf16.mxu0 0
        %1205 = vmatpush1.bf16.msra.mxu0 0
        %1206 = vmatprep.subr.bf16.mxu0 0
        %1207 = vmatpush1.bf16.msra.mxu0 0
        %1208 = vmatprep.subr.bf16.mxu0 0
        %1209 = vmatpush1.bf16.msra.mxu0 0
        %1210 = vmatprep.subr.bf16.mxu0 0
        %1211 = vmatpush1.bf16.msra.mxu0 0
        %1212 = vmatprep.subr.bf16.mxu0 0
        %1213 = vmatpush1.bf16.msra.mxu0 0
        %1214 = vmatprep.subr.bf16.mxu0 0
        %1215 = vmatpush1.bf16.msra.mxu0 0
        %1216 = vmatprep.subr.bf16.mxu0 0
        %1217 = vmatpush1.bf16.msra.mxu0 0
        %1218 = vmatprep.subr.bf16.mxu0 0
        %1219 = vmatpush1.bf16.msra.mxu0 %v1202
        %1220 = vmatprep.subr.bf16.mxu0 0
        %1221 = vmatpush2.bf16.msra.mxu0 0
        %1222 = vmatprep.subr.bf16.mxu0 0
        %1223 = vmatpush2.bf16.msra.mxu0 0
        %1224 = vmatprep.subr.bf16.mxu0 0
        %1225 = vmatpush2.bf16.msra.mxu0 0
        %1226 = vmatprep.subr.bf16.mxu0 0
        %1227 = vmatpush2.bf16.msra.mxu0 0
        %1228 = vmatprep.subr.bf16.mxu0 0
        %1229 = vmatpush2.bf16.msra.mxu0 0
        %1230 = vmatprep.subr.bf16.mxu0 0
        %1231 = vmatpush2.bf16.msra.mxu0 0
        %1232 = vmatprep.subr.bf16.mxu0 0
        %1233 = vmatpush2.bf16.msra.mxu0 0
        %1234 = vmatprep.subr.bf16.mxu0 0
        %1235 = vmatpush2.bf16.msra.mxu0 0
        %1236 = vmatprep.mubr.bf16.mxu0 0
        %1237 = vmatmul.mubr.bf16.gmra.mxu0 %v1198
        %v1238 = vpop.f32.mrf.mxu0
        %v1239 = vadd.f32 0.0, %v1238
        %v1240 = vpop.f32.mrf.mxu0
        %v1241 = vpop.f32.mrf.mxu0
        %v1242 = vpop.f32.mrf.mxu0
        %1243 = vdwg.mxu0
        %v1245 = vsel %vm964, %v1194, 0
        %v1248 = vsel %vm1200, %v961, 0
        %1250 = vmatprep.subr.bf16.mxu0 0
        %1251 = vmatpush1.bf16.msra.mxu0 0
        %1252 = vmatprep.subr.bf16.mxu0 0
        %1253 = vmatpush1.bf16.msra.mxu0 0
        %1254 = vmatprep.subr.bf16.mxu0 0
        %1255 = vmatpush1.bf16.msra.mxu0 0
        %1256 = vmatprep.subr.bf16.mxu0 0
        %1257 = vmatpush1.bf16.msra.mxu0 0
        %1258 = vmatprep.subr.bf16.mxu0 0
        %1259 = vmatpush1.bf16.msra.mxu0 0
        %1260 = vmatprep.subr.bf16.mxu0 0
        %1261 = vmatpush1.bf16.msra.mxu0 0
        %1262 = vmatprep.subr.bf16.mxu0 0
        %1263 = vmatpush1.bf16.msra.mxu0 0
        %1264 = vmatprep.subr.bf16.mxu0 0
        %1265 = vmatpush1.bf16.msra.mxu0 %v1248
        %1266 = vmatprep.subr.bf16.mxu0 0
        %1267 = vmatpush2.bf16.msra.mxu0 0
        %1268 = vmatprep.subr.bf16.mxu0 0
        %1269 = vmatpush2.bf16.msra.mxu0 0
        %1270 = vmatprep.subr.bf16.mxu0 0
        %1271 = vmatpush2.bf16.msra.mxu0 0
        %1272 = vmatprep.subr.bf16.mxu0 0
        %1273 = vmatpush2.bf16.msra.mxu0 0
        %1274 = vmatprep.subr.bf16.mxu0 0
        %1275 = vmatpush2.bf16.msra.mxu0 0
        %1276 = vmatprep.subr.bf16.mxu0 0
        %1277 = vmatpush2.bf16.msra.mxu0 0
        %1278 = vmatprep.subr.bf16.mxu0 0
        %1279 = vmatpush2.bf16.msra.mxu0 0
        %1280 = vmatprep.subr.bf16.mxu0 0
        %1281 = vmatpush2.bf16.msra.mxu0 0
        %1282 = vmatprep.mubr.bf16.mxu0 0
        %1283 = vmatmul.mubr.bf16.gmra.mxu0 %v1245
        %v1284 = vpop.f32.mrf.mxu0
        %v1285 = vadd.f32 0.0, %v1284
        %v1286 = vpop.f32.mrf.mxu0
        %v1287 = vpop.f32.mrf.mxu0
        %v1288 = vpop.f32.mrf.mxu0
        %1289 = vdwg.mxu0
        %v1291 = vsel %vm964, %v1195, 0
        %v1294 = vsel %vm1200, %v962, 0
        %1296 = vmatprep.subr.bf16.mxu0 0
        %1297 = vmatpush1.bf16.msra.mxu0 0
        %1298 = vmatprep.subr.bf16.mxu0 0
        %1299 = vmatpush1.bf16.msra.mxu0 0
        %1300 = vmatprep.subr.bf16.mxu0 0
        %1301 = vmatpush1.bf16.msra.mxu0 0
        %1302 = vmatprep.subr.bf16.mxu0 0
        %1303 = vmatpush1.bf16.msra.mxu0 0
        %1304 = vmatprep.subr.bf16.mxu0 0
        %1305 = vmatpush1.bf16.msra.mxu0 0
        %1306 = vmatprep.subr.bf16.mxu0 0
        %1307 = vmatpush1.bf16.msra.mxu0 0
        %1308 = vmatprep.subr.bf16.mxu0 0
        %1309 = vmatpush1.bf16.msra.mxu0 0
        %1310 = vmatprep.subr.bf16.mxu0 0
        %1311 = vmatpush1.bf16.msra.mxu0 %v1294
        %1312 = vmatprep.subr.bf16.mxu0 0
        %1313 = vmatpush2.bf16.msra.mxu0 0
        %1314 = vmatprep.subr.bf16.mxu0 0
        %1315 = vmatpush2.bf16.msra.mxu0 0
        %1316 = vmatprep.subr.bf16.mxu0 0
        %1317 = vmatpush2.bf16.msra.mxu0 0
        %1318 = vmatprep.subr.bf16.mxu0 0
        %1319 = vmatpush2.bf16.msra.mxu0 0
        %1320 = vmatprep.subr.bf16.mxu0 0
        %1321 = vmatpush2.bf16.msra.mxu0 0
        %1322 = vmatprep.subr.bf16.mxu0 0
        %1323 = vmatpush2.bf16.msra.mxu0 0
        %1324 = vmatprep.subr.bf16.mxu0 0
        %1325 = vmatpush2.bf16.msra.mxu0 0
        %1326 = vmatprep.subr.bf16.mxu0 0
        %1327 = vmatpush2.bf16.msra.mxu0 0
        %1328 = vmatprep.mubr.bf16.mxu0 0
        %1329 = vmatmul.mubr.bf16.gmra.mxu0 %v1291
        %v1330 = vpop.f32.mrf.mxu0
        %v1331 = vadd.f32 0.0, %v1330
        %v1332 = vpop.f32.mrf.mxu0
        %v1333 = vpop.f32.mrf.mxu0
        %v1334 = vpop.f32.mrf.mxu0
        %1335 = vdwg.mxu0
        %v1337 = vsel %vm964, %v1196, 0
        %v1340 = vsel %vm1200, %v963, 0
        %1342 = vmatprep.subr.bf16.mxu0 0
        %1343 = vmatpush1.bf16.msra.mxu0 0
        %1344 = vmatprep.subr.bf16.mxu0 0
        %1345 = vmatpush1.bf16.msra.mxu0 0
        %1346 = vmatprep.subr.bf16.mxu0 0
        %1347 = vmatpush1.bf16.msra.mxu0 0
        %1348 = vmatprep.subr.bf16.mxu0 0
        %1349 = vmatpush1.bf16.msra.mxu0 0
        %1350 = vmatprep.subr.bf16.mxu0 0
        %1351 = vmatpush1.bf16.msra.mxu0 0
        %1352 = vmatprep.subr.bf16.mxu0 0
        %1353 = vmatpush1.bf16.msra.mxu0 0
        %1354 = vmatprep.subr.bf16.mxu0 0
        %1355 = vmatpush1.bf16.msra.mxu0 0
        %1356 = vmatprep.subr.bf16.mxu0 0
        %1357 = vmatpush1.bf16.msra.mxu0 %v1340
        %1358 = vmatprep.subr.bf16.mxu0 0
        %1359 = vmatpush2.bf16.msra.mxu0 0
        %1360 = vmatprep.subr.bf16.mxu0 0
        %1361 = vmatpush2.bf16.msra.mxu0 0
        %1362 = vmatprep.subr.bf16.mxu0 0
        %1363 = vmatpush2.bf16.msra.mxu0 0
        %1364 = vmatprep.subr.bf16.mxu0 0
        %1365 = vmatpush2.bf16.msra.mxu0 0
        %1366 = vmatprep.subr.bf16.mxu0 0
        %1367 = vmatpush2.bf16.msra.mxu0 0
        %1368 = vmatprep.subr.bf16.mxu0 0
        %1369 = vmatpush2.bf16.msra.mxu0 0
        %1370 = vmatprep.subr.bf16.mxu0 0
        %1371 = vmatpush2.bf16.msra.mxu0 0
        %1372 = vmatprep.subr.bf16.mxu0 0
        %1373 = vmatpush2.bf16.msra.mxu0 0
        %1374 = vmatprep.mubr.bf16.mxu0 0
        %1375 = vmatmul.mubr.bf16.gmra.mxu0 %v1337
        %v1376 = vpop.f32.mrf.mxu0
        %v1377 = vadd.f32 0.0, %v1376
        %v1378 = vpop.f32.mrf.mxu0
        %v1379 = vpop.f32.mrf.mxu0
        %v1380 = vpop.f32.mrf.mxu0
        %1381 = vdwg.mxu0
        %v1382 = vcombine.low %v1239, %v1331
        %v1383 = vcombine.high %v1239, %v1331
        %v1385 = vunpack.c.l.s4 1983009808
        %v1386 = vunpack.c.0.s8 %v1385
        %v1387 = vlaneseq
        %v1388 = vshrl.u32 %v1387, 7
        %v1389 = vsub.s32 %v1386, %v1388
        %v1390 = vrot.slane %v1382, %v1389
        %v1392 = vunpack.c.l.s4 1983009808
        %v1393 = vunpack.c.0.s8 %v1392
        %v1394 = vlaneseq
        %v1395 = vshrl.u32 %v1394, 7
        %v1396 = vsub.s32 %v1393, %v1395
        %v1397 = vrot.slane %v1383, %v1396
        %v1398 = vcombine.low %v1285, %v1377
        %v1399 = vcombine.high %v1285, %v1377
        %v1401 = vunpack.c.l.s4 1983009808
        %v1402 = vunpack.c.0.s8 %v1401
        %v1403 = vlaneseq
        %v1404 = vshrl.u32 %v1403, 7
        %v1405 = vsub.s32 %v1402, %v1404
        %v1406 = vrot.slane %v1398, %v1405
        %v1408 = vunpack.c.l.s4 1983009808
        %v1409 = vunpack.c.0.s8 %v1408
        %v1410 = vlaneseq
        %v1411 = vshrl.u32 %v1410, 7
        %v1412 = vsub.s32 %v1409, %v1411
        %v1413 = vrot.slane %v1399, %v1412
        %v1414 = vcombine.low %v1390, %v1406
        %v1415 = vcombine.high %v1390, %v1406
        %v1417 = vunpack.c.l.s4 1934713408
        %v1418 = vunpack.c.0.s8 %v1417
        %v1419 = vlaneseq
        %v1420 = vshrl.u32 %v1419, 7
        %v1421 = vsub.s32 %v1418, %v1420
        %v1422 = vrot.slane %v1414, %v1421
        %v1424 = vunpack.c.l.s4 1934713408
        %v1425 = vunpack.c.0.s8 %v1424
        %v1426 = vlaneseq
        %v1427 = vshrl.u32 %v1426, 7
        %v1428 = vsub.s32 %v1425, %v1427
        %v1429 = vrot.slane %v1415, %v1428
        %v1430 = vcombine.low %v1397, %v1413
        %v1431 = vcombine.high %v1397, %v1413
        %v1433 = vunpack.c.l.s4 1934713408
        %v1434 = vunpack.c.0.s8 %v1433
        %v1435 = vlaneseq
        %v1436 = vshrl.u32 %v1435, 7
        %v1437 = vsub.s32 %v1434, %v1436
        %v1438 = vrot.slane %v1430, %v1437
        %v1440 = vunpack.c.l.s4 1934713408
        %v1441 = vunpack.c.0.s8 %v1440
        %v1442 = vlaneseq
        %v1443 = vshrl.u32 %v1442, 7
        %v1444 = vsub.s32 %v1441, %v1443
        %v1445 = vrot.slane %v1431, %v1444
        %v1446 = vcombine.high %v1422, 0.0
        %v1447 = vcombine.high %v1429, 0.0
        %v1448 = vcombine.high %v1438, 0.0
        %v1449 = vcombine.high %v1445, 0.0
        %v1450 = vcombine.low %v1422, %v1429
        %v1452 = vunpack.c.l.s4 1983009808
        %v1453 = vunpack.c.0.s8 %v1452
        %v1454 = vlaneseq
        %v1455 = vshrl.u32 %v1454, 7
        %v1456 = vsub.s32 %v1453, %v1455
        %v1457 = vrot.slane %v1450, %v1456
        %v1458 = vcombine.low %v1446, %v1447
        %v1460 = vunpack.c.l.s4 1983009808
        %v1461 = vunpack.c.0.s8 %v1460
        %v1462 = vlaneseq
        %v1463 = vshrl.u32 %v1462, 7
        %v1464 = vsub.s32 %v1461, %v1463
        %v1465 = vrot.slane %v1458, %v1464
        %v1466 = vcombine.low %v1438, %v1445
        %v1468 = vunpack.c.l.s4 1983009808
        %v1469 = vunpack.c.0.s8 %v1468
        %v1470 = vlaneseq
        %v1471 = vshrl.u32 %v1470, 7
        %v1472 = vsub.s32 %v1469, %v1471
        %v1473 = vrot.slane %v1466, %v1472
        %v1474 = vcombine.low %v1448, %v1449
        %v1476 = vunpack.c.l.s4 1983009808
        %v1477 = vunpack.c.0.s8 %v1476
        %v1478 = vlaneseq
        %v1479 = vshrl.u32 %v1478, 7
        %v1480 = vsub.s32 %v1477, %v1479
        %v1481 = vrot.slane %v1474, %v1480
        %v1482 = vcombine.low %v1457, %v1465
        %v1483 = vcombine.high %v1457, %v1465
        %v1485 = vunpack.c.l.s4 1934713408
        %v1486 = vunpack.c.0.s8 %v1485
        %v1487 = vlaneseq
        %v1488 = vshrl.u32 %v1487, 7
        %v1489 = vsub.s32 %v1486, %v1488
        %v1490 = vrot.slane %v1482, %v1489
        %v1492 = vunpack.c.l.s4 1934713408
        %v1493 = vunpack.c.0.s8 %v1492
        %v1494 = vlaneseq
        %v1495 = vshrl.u32 %v1494, 7
        %v1496 = vsub.s32 %v1493, %v1495
        %v1497 = vrot.slane %v1483, %v1496
        %v1498 = vcombine.low %v1473, %v1481
        %v1499 = vcombine.high %v1473, %v1481
        %v1501 = vunpack.c.l.s4 1934713408
        %v1502 = vunpack.c.0.s8 %v1501
        %v1503 = vlaneseq
        %v1504 = vshrl.u32 %v1503, 7
        %v1505 = vsub.s32 %v1502, %v1504
        %v1506 = vrot.slane %v1498, %v1505
        %v1508 = vunpack.c.l.s4 1934713408
        %v1509 = vunpack.c.0.s8 %v1508
        %v1510 = vlaneseq
        %v1511 = vshrl.u32 %v1510, 7
        %v1512 = vsub.s32 %v1509, %v1511
        %v1513 = vrot.slane %v1499, %v1512
        %v1514 = vcombine.low %v1490, %v1506
        %v1515 = vcombine.high %v1490, %v1506
        %v1516 = vcombine.low %v1497, %v1513
        %v1517 = vcombine.high %v1497, %v1513
        %1519 = vrot.lane.b32.xlu0 %v1515, 8
        %v1520 = vpop.permute.xlu0 %1519
        %1523 = vrot.lane.b32.xlu0 %v1516, 16
        %v1524 = vpop.permute.xlu0 %1523
        %1527 = vrot.lane.b32.xlu0 %v1517, 24
        %v1528 = vpop.permute.xlu0 %1527
        %v1530 = vsel %vm964, %v1514, %v1520
        %vm1531 = vcmask 130048
        %v1532 = vsel %vm1531, %v1530, %v1524
        %vm1533 = vcmask 195584
        %v1534 = vsel %vm1533, %v1532, %v1528
        %v1535 = vpack.c.bf16 %v1534, %v1534
        %v1536 = vld [vmem:[%s381] sm:$0xf]
        %v1537 = vld [vmem:[%s381 + $0x4] sm:$0xf]
        %v1538 = vld [vmem:[%s381 + $0x8] sm:$0xf]
        %v1539 = vld [vmem:[%s381 + $0xc] sm:$0xf]
        %v1540 = vlaneseq
        %v1541 = vshrl.u32 %v1540, 7
        %v1542 = vsub.s32 3, %v1541
        %v1543 = vrot.slane %v409, %v1542
        %v1548 = vunpack.c.l.b16 %v1536
        %v1549 = vunpack.c.l.b16 %v1537
        %v1550 = vunpack.c.l.b16 %v1538
        %v1551 = vunpack.c.l.b16 %v1539
        %v1552 = vpack.c.b16 %v1549, %v1548
        %v1553 = vpack.c.b16 %v1551, %v1550
        %v1557 = vsel %vm429, %v1535, 0
        %1559 = vmatprep.subr.bf16.mxu0 0
        %1560 = vmatpush1.bf16.msra.mxu0 0
        %1561 = vmatprep.subr.bf16.mxu0 0
        %1562 = vmatpush1.bf16.msra.mxu0 0
        %1563 = vmatprep.subr.bf16.mxu0 0
        %1564 = vmatpush1.bf16.msra.mxu0 0
        %1565 = vmatprep.subr.bf16.mxu0 0
        %1566 = vmatpush1.bf16.msra.mxu0 0
        %1567 = vmatprep.subr.bf16.mxu0 0
        %1568 = vmatpush1.bf16.msra.mxu0 0
        %1569 = vmatprep.subr.bf16.mxu0 0
        %1570 = vmatpush1.bf16.msra.mxu0 0
        %1571 = vmatprep.subr.bf16.mxu0 0
        %1572 = vmatpush1.bf16.msra.mxu0 %v1553
        %1573 = vmatprep.subr.bf16.mxu0 0
        %1574 = vmatpush1.bf16.msra.mxu0 %v1552
        %1575 = vmatprep.subr.bf16.mxu0 0
        %1576 = vmatpush2.bf16.msra.mxu0 0
        %1577 = vmatprep.subr.bf16.mxu0 0
        %1578 = vmatpush2.bf16.msra.mxu0 0
        %1579 = vmatprep.subr.bf16.mxu0 0
        %1580 = vmatpush2.bf16.msra.mxu0 0
        %1581 = vmatprep.subr.bf16.mxu0 0
        %1582 = vmatpush2.bf16.msra.mxu0 0
        %1583 = vmatprep.subr.bf16.mxu0 0
        %1584 = vmatpush2.bf16.msra.mxu0 0
        %1585 = vmatprep.subr.bf16.mxu0 0
        %1586 = vmatpush2.bf16.msra.mxu0 0
        %1587 = vmatprep.subr.bf16.mxu0 0
        %1588 = vmatpush2.bf16.msra.mxu0 0
        %1589 = vmatprep.subr.bf16.mxu0 0
        %1590 = vmatpush2.bf16.msra.mxu0 0
        %1591 = vmatprep.mubr.bf16.mxu0 0
        %1592 = vmatmul.mubr.bf16.gmra.mxu0 %v1557
        %v1593 = vpop.f32.mrf.mxu0
        %v1594 = vadd.f32 %v1543, %v1593
        %v1595 = vpop.f32.mrf.mxu0
        %v1596 = vpop.f32.mrf.mxu0
        %v1597 = vpop.f32.mrf.mxu0
        %1598 = vdwg.mxu0
        %v1599 = vadd.f32 %v408, %v1594
        %v1600 = vsel %vm429, %v1599, 0.0
        %1601 = vadd.xlane.f32.xlu0 %v1600
        %v1602 = vpop.xlane.xlu0 %1601
        %v1603 = vrcp.pop 32.0
        %v1604 = vmul.f32 %v1602, %v1603
        %v1605 = vsub.f32 %v1599, %v1604
        %v1606 = vmul.f32 %v1605, %v1605
        %v1607 = vsel %vm429, %v1606, 0.0
        %1608 = vadd.xlane.f32.xlu0 %v1607
        %v1609 = vpop.xlane.xlu0 %1608
        %v1610 = vmul.f32 %v1609, %v1603
        %v1611 = vadd.f32 %v1610, 1e-05
        %v1612 = vrsqrt.pop %v1611
        %v1613 = vmul.f32 %v1605, %v1612
        %v1614 = vlaneseq
        %v1615 = vshrl.u32 %v1614, 7
        %v1616 = vsub.s32 4, %v1615
        %v1617 = vrot.slane %v409, %v1616
        %v1618 = vmul.f32 %v1613, %v1617
        %v1619 = vlaneseq
        %v1620 = vshrl.u32 %v1619, 7
        %v1621 = vsub.s32 5, %v1620
        %v1622 = vrot.slane %v409, %v1621
        %v1623 = vadd.f32 %v1618, %v1622
        %v1624 = vpack.c.bf16 %v1623, %v1623
        %v1625 = vld [vmem:[%s386] sm:$0xf]
        %v1626 = vld [vmem:[%s386 + $0x4] sm:$0xf]
        %v1627 = vld [vmem:[%s386 + $0x8] sm:$0xf]
        %v1628 = vld [vmem:[%s386 + $0xc] sm:$0xf]
        %v1630 = vlaneseq
        %v1631 = vshrl.u32 %v1630, 7
        %v1632 = vsub.s32 0, %v1631
        %v1633 = vrot.slane %v411, %v1632
        %v1639 = vunpack.c.l.b16 %v1625
        %v1640 = vunpack.c.l.b16 %v1626
        %v1641 = vunpack.c.l.b16 %v1627
        %v1642 = vunpack.c.l.b16 %v1628
        %v1643 = vpack.c.b16 %v1640, %v1639
        %v1644 = vpack.c.b16 %v1642, %v1641
        %v1648 = vsel %vm429, %v1624, 0
        %1650 = vmatprep.subr.bf16.mxu0 0
        %1651 = vmatpush1.bf16.msra.mxu0 0
        %1652 = vmatprep.subr.bf16.mxu0 0
        %1653 = vmatpush1.bf16.msra.mxu0 0
        %1654 = vmatprep.subr.bf16.mxu0 0
        %1655 = vmatpush1.bf16.msra.mxu0 0
        %1656 = vmatprep.subr.bf16.mxu0 0
        %1657 = vmatpush1.bf16.msra.mxu0 0
        %1658 = vmatprep.subr.bf16.mxu0 0
        %1659 = vmatpush1.bf16.msra.mxu0 0
        %1660 = vmatprep.subr.bf16.mxu0 0
        %1661 = vmatpush1.bf16.msra.mxu0 0
        %1662 = vmatprep.subr.bf16.mxu0 0
        %1663 = vmatpush1.bf16.msra.mxu0 %v1644
        %1664 = vmatprep.subr.bf16.mxu0 0
        %1665 = vmatpush1.bf16.msra.mxu0 %v1643
        %1666 = vmatprep.subr.bf16.mxu0 0
        %1667 = vmatpush2.bf16.msra.mxu0 0
        %1668 = vmatprep.subr.bf16.mxu0 0
        %1669 = vmatpush2.bf16.msra.mxu0 0
        %1670 = vmatprep.subr.bf16.mxu0 0
        %1671 = vmatpush2.bf16.msra.mxu0 0
        %1672 = vmatprep.subr.bf16.mxu0 0
        %1673 = vmatpush2.bf16.msra.mxu0 0
        %1674 = vmatprep.subr.bf16.mxu0 0
        %1675 = vmatpush2.bf16.msra.mxu0 0
        %1676 = vmatprep.subr.bf16.mxu0 0
        %1677 = vmatpush2.bf16.msra.mxu0 0
        %1678 = vmatprep.subr.bf16.mxu0 0
        %1679 = vmatpush2.bf16.msra.mxu0 0
        %1680 = vmatprep.subr.bf16.mxu0 0
        %1681 = vmatpush2.bf16.msra.mxu0 0
        %1682 = vmatprep.mubr.bf16.mxu0 0
        %1683 = vmatmul.mubr.bf16.gmra.mxu0 %v1648
        %v1684 = vpop.f32.mrf.mxu0
        %v1685 = vadd.f32 %v1633, %v1684
        %v1686 = vpop.f32.mrf.mxu0
        %v1687 = vpop.f32.mrf.mxu0
        %v1688 = vpop.f32.mrf.mxu0
        %1689 = vdwg.mxu0
        %v1690 = vmax.f32 %v1685, 0.0
        %v1691 = vpack.c.bf16 %v1690, %v1690
        %v1692 = vld [vmem:[%s391] sm:$0xf]
        %v1693 = vld [vmem:[%s391 + $0x4] sm:$0xf]
        %v1694 = vld [vmem:[%s391 + $0x8] sm:$0xf]
        %v1695 = vld [vmem:[%s391 + $0xc] sm:$0xf]
        %v1696 = vld [vmem:[%s391 + $0x10] sm:$0xf]
        %v1697 = vld [vmem:[%s391 + $0x14] sm:$0xf]
        %v1698 = vld [vmem:[%s391 + $0x18] sm:$0xf]
        %v1699 = vld [vmem:[%s391 + $0x1c] sm:$0xf]
        %v1700 = vlaneseq
        %v1701 = vshrl.u32 %v1700, 7
        %v1702 = vsub.s32 6, %v1701
        %v1703 = vrot.slane %v409, %v1702
        %v1712 = vunpack.c.l.b16 %v1692
        %v1713 = vunpack.c.l.b16 %v1693
        %v1714 = vunpack.c.l.b16 %v1694
        %v1715 = vunpack.c.l.b16 %v1695
        %v1716 = vunpack.c.l.b16 %v1696
        %v1717 = vunpack.c.l.b16 %v1697
        %v1718 = vunpack.c.l.b16 %v1698
        %v1719 = vunpack.c.l.b16 %v1699
        %v1720 = vpack.c.b16 %v1713, %v1712
        %v1721 = vpack.c.b16 %v1715, %v1714
        %v1722 = vpack.c.b16 %v1717, %v1716
        %v1723 = vpack.c.b16 %v1719, %v1718
        %vm1728 = vcmask 523264
        %v1730 = vsel %vm1728, %v1691, 0
        %1732 = vmatprep.subr.bf16.mxu0 0
        %1733 = vmatpush1.bf16.msra.mxu0 0
        %1734 = vmatprep.subr.bf16.mxu0 0
        %1735 = vmatpush1.bf16.msra.mxu0 0
        %1736 = vmatprep.subr.bf16.mxu0 0
        %1737 = vmatpush1.bf16.msra.mxu0 0
        %1738 = vmatprep.subr.bf16.mxu0 0
        %1739 = vmatpush1.bf16.msra.mxu0 0
        %1740 = vmatprep.subr.bf16.mxu0 0
        %1741 = vmatpush1.bf16.msra.mxu0 %v1723
        %1742 = vmatprep.subr.bf16.mxu0 0
        %1743 = vmatpush1.bf16.msra.mxu0 %v1722
        %1744 = vmatprep.subr.bf16.mxu0 0
        %1745 = vmatpush1.bf16.msra.mxu0 %v1721
        %1746 = vmatprep.subr.bf16.mxu0 0
        %1747 = vmatpush1.bf16.msra.mxu0 %v1720
        %1748 = vmatprep.subr.bf16.mxu0 0
        %1749 = vmatpush2.bf16.msra.mxu0 0
        %1750 = vmatprep.subr.bf16.mxu0 0
        %1751 = vmatpush2.bf16.msra.mxu0 0
        %1752 = vmatprep.subr.bf16.mxu0 0
        %1753 = vmatpush2.bf16.msra.mxu0 0
        %1754 = vmatprep.subr.bf16.mxu0 0
        %1755 = vmatpush2.bf16.msra.mxu0 0
        %1756 = vmatprep.subr.bf16.mxu0 0
        %1757 = vmatpush2.bf16.msra.mxu0 0
        %1758 = vmatprep.subr.bf16.mxu0 0
        %1759 = vmatpush2.bf16.msra.mxu0 0
        %1760 = vmatprep.subr.bf16.mxu0 0
        %1761 = vmatpush2.bf16.msra.mxu0 0
        %1762 = vmatprep.subr.bf16.mxu0 0
        %1763 = vmatpush2.bf16.msra.mxu0 0
        %1764 = vmatprep.mubr.bf16.mxu0 0
        %1765 = vmatmul.mubr.bf16.gmra.mxu0 %v1730
        %v1766 = vpop.f32.mrf.mxu0
        %v1767 = vadd.f32 %v1703, %v1766
        %v1768 = vpop.f32.mrf.mxu0
        %v1769 = vpop.f32.mrf.mxu0
        %v1770 = vpop.f32.mrf.mxu0
        %1771 = vdwg.mxu0
        %v1772 = vadd.f32 %v1623, %v1767
        %v1773 = vsel %vm429, %v1772, 0.0
        %1774 = vadd.xlane.f32.xlu0 %v1773
        %v1775 = vpop.xlane.xlu0 %1774
        %v1776 = vmul.f32 %v1775, %v1603
        %v1777 = vsub.f32 %v1772, %v1776
        %v1778 = vmul.f32 %v1777, %v1777
        %v1779 = vsel %vm429, %v1778, 0.0
        %1780 = vadd.xlane.f32.xlu0 %v1779
        %v1781 = vpop.xlane.xlu0 %1780
        %v1782 = vmul.f32 %v1781, %v1603
        %v1783 = vadd.f32 %v1782, 1e-05
        %v1784 = vrsqrt.pop %v1783
        %v1785 = vmul.f32 %v1777, %v1784
        %v1786 = vlaneseq
        %v1787 = vshrl.u32 %v1786, 7
        %v1788 = vsub.s32 7, %v1787
        %v1789 = vrot.slane %v409, %v1788
        %v1790 = vmul.f32 %v1785, %v1789
        %v1791 = vlaneseq
        %v1792 = vshrl.u32 %v1791, 7
        %v1793 = vsub.s32 0, %v1792
        %v1794 = vrot.slane %v410, %v1793
        %v1795 = vadd.f32 %v1790, %v1794
        %1796 = vst.msk [vmem:[#allocation2] sm:$0xff] %vm429, %v1795
        %p1797 = scmp.eq.s32.totalorder %s26, 1
        // Predicated region
        $region53: #{tpu_custom_call.1} parent=47 // pred_check
          %p1798 = pneg %p1797
        $region54: #{tpu_custom_call.1} parent=47 // pred_check_branch
          %1800 = sbr.rel (%p1798) target = $region56
        $region55: #{tpu_custom_call.1} parent=47 // pred_region
          %1801 = vst.msk [vmem:[%s367] sm:$0xff] %vm429, %v1795
        $region56: #{tpu_custom_call.1} parent=47 // pred_fallthru
          _
        %s1802 = sand.u32 %s223, 1
        %s1803 = scalar_lea.sflag [#allocation4], %s1802
        %s1804 = sand.u32 %s223, 1
        %s1805 = smul.addr %s1804, 8
        %s1806 = scalar_lea.vmem [#allocation3], %s1805
        // Predicated region
        $region57: #{tpu_custom_call.1} parent=47 // pred_check
          %p1807 = pneg %p233
        $region58: #{tpu_custom_call.1} parent=47 // pred_check_branch
          %1809 = sbr.rel (%p1807) target = $region60
        $region59: #{tpu_custom_call.1} parent=47 // pred_region
          %s1811 = ssub.s32 128, 128
          %1812 = vsyncadd %s1803, %s1811
          %s1813 = smul.addr %s25, 128
          %s1814 = scalar_lea.hbm %s7, %s1813
          %s1816 = sshll.u32 %s1806, 4
          %s1817 = int_to_ptr.vmem [resolvable:$true] %s1816
          %1819 = dma.vmem_to_hbm [thread:$0]  %s1817, 128, %s1814, %s1803
        $region60: #{tpu_custom_call.1} parent=47 // pred_fallthru
          _
      $region48: #{tpu_custom_call.1} parent=5 // pred_fallthru
        _
      %p1820 = scmp.le.s32.totalorder 2, %s16
      // Predicated region
      $region61: #{tpu_custom_call.1} parent=5 // pred_check
        %p1821 = pneg %p1820
      $region62: #{tpu_custom_call.1} parent=5 // pred_check_branch
        %1823 = sbr.rel (%p1821) target = $region64
      $region63: #{tpu_custom_call.1} parent=5 // pred_region
        %s1824 = ssub.s32 %s16, 2
        // Predicated region
        $region65: #{tpu_custom_call.1} parent=63 // pred_check
          %p1825 = pneg %p239
        $region66: #{tpu_custom_call.1} parent=63 // pred_check_branch
          %1827 = sbr.rel (%p1825) target = $region68
        $region67: #{tpu_custom_call.1} parent=63 // pred_region
          %s1828 = sand.u32 %s224, 1
          %s1829 = scalar_lea.sflag [#allocation4], %s1828
          %s1830 = sand.u32 %s224, 1
          %s1831 = smul.addr %s1830, 8
          %s1832 = scalar_lea.vmem [#allocation3], %s1831
          %1833 = dma.done %s1829, 128
        $region68: #{tpu_custom_call.1} parent=63 // pred_fallthru
          _
      $region64: #{tpu_custom_call.1} parent=5 // pred_fallthru
        _
    $region6: #{tpu_custom_call.1} parent=1 // loop_footer
      %s20 = sadd.s32 1, %s16
    $region7: #{tpu_custom_call.1} parent=1 // loop_footer_branch
      %15 = sbr.rel target = $region3
    $region8: #{tpu_custom_call.1} parent=1 // loop_exit
      _
    %1834 = vsyncpa [#allocation4], 1
    %s1835 = scalar_lea.sflag [#allocation4], 1
    %1836 = vsyncpa %s1835, 1

</llo_original>
